<compile_context>
chip_gen: v7x
topology: tpu7x:2x2x1
jax: 0.10.0
libtpu: 0.0.40
codegen_flags: <defaults>
</compile_context>

<pallas_src>
import math

import jax
import jax.numpy as jnp
from jax.experimental import pallas as pl
from jax.experimental.pallas import tpu as pltpu

# ---------------- problem sizes (small, consistent with the module) -----------------
B = 2          # batch
S = 8          # sequence length
D = 32         # input_size / embedding dim
H = 32         # hidden_size
O = 8          # output_size
F_INFO = 4     # per-layer info feature width (LayerInfoEncoder stand-in)

G4 = 4 * H     # 128 : one layer's gate width
G8 = 8 * H     # 256 : both layers' gates (fused per-step dot output width)


# =====================================================================================
# Pallas kernel: embedding -> attention-linear -> scaled-dot self-attention ->
# interleaved 2-layer LSTM (one fused MXU dot per step) -> 2-layer neck MLP.
# =====================================================================================
def policy_kernel(info_ref, prune_ref, wemb_ref, wmain_ref, bias_ref, out_ref, h1_scr):
    f32 = jnp.float32
    bf16 = jnp.bfloat16

    # ---- static views into the packed slabs (pre-transposed / gate-permuted host-side) ----
    w_emb   = wemb_ref[0:F_INFO, :]                              # (4, 32)  fuse_w[1]*w_info.T
    w_prune = wemb_ref[F_INFO, :]                                # (32,)    fuse_w[0]*w_prune col
    pe      = wemb_ref[F_INFO + 1:F_INFO + 1 + S, :]             # (8, 32)  positional encoding

    wx    = wmain_ref[0:D, :]                                    # (32, 256) [wih0_t | 0]
    wstep = wmain_ref[D:D + 2 * H, :]                            # (64, 256) [[whh0_t|wih1_t],[0|whh1_t]]
    watt  = wmain_ref[D + 2 * H:D + 3 * H, 0:D]                  # (32, 32)  attention linear
    wn1   = wmain_ref[D + 2 * H:D + 3 * H, D:D + H // 2]         # (32, 16)  neck 1
    wn2   = wmain_ref[D + 3 * H:D + 3 * H + H // 2, 0:H // 2]    # (16, 16)  neck 2 (cols>=O zero)

    g_bias = bias_ref[0, :]                                      # (256,) [b0 | b1] (gate-reordered)
    batt   = bias_ref[1, 0:D]                                    # (32,)
    bn1    = bias_ref[1, D:D + H // 2]                           # (16,)
    bn2    = bias_ref[1, D + H // 2:D + H]                       # (16,) zeros past O

    # ---- input embedding (encoder stand-ins fused into the kernel; f32) ----
    info = info_ref[...]                                         # (B, S, 4)
    prune = prune_ref[...]                                       # (B, S, 1)
    layer_enc = jnp.dot(info.reshape(B * S, F_INFO), w_emb,
                        preferred_element_type=f32).reshape(B, S, D)
    x = layer_enc + prune * w_prune[None, None, :] + pe[None, :, :]          # (B, S, D)

    # ---- self.attention (Linear D->D): bf16 MXU operands, f32 accumulate ----
    xa = (jnp.dot(x.reshape(B * S, D).astype(bf16), watt,
                  preferred_element_type=f32) + batt).reshape(B, S, D)

    # ---- scaled dot-product self-attention (f32; one-time, off the serial path) ----
    score = jax.lax.dot_general(xa, xa, (((2,), (2,)), ((0,), (0,))),
                                preferred_element_type=f32) * (1.0 / math.sqrt(D))
    m = jnp.max(score, axis=-1, keepdims=True)
    e = jnp.exp(score - m)
    attn = e * pl.reciprocal(jnp.sum(e, axis=-1, keepdims=True), approx=True)
    ctx = jax.lax.dot_general(attn, xa, (((2,), (1,)), ((0,), (0,))),
                              preferred_element_type=f32)                    # (B, S, D)

    # ---- per-timestep gate bias for ALL steps at once (off the serial path):
    # lanes 0:128 = x@wih0 + b0 (layer-0 pre-activation), lanes 128:256 = b1 ----
    pre_all = (jnp.dot(ctx.reshape(B * S, D).astype(bf16), wx,
                       preferred_element_type=f32) + g_bias).reshape(B, S, G8)

    # ---- interleaved 2-layer LSTM: ONE fused (B,2H)@(2H,8H) bf16 MXU dot per step ----
    def cell(sig, th, c):
        # gate columns were permuted host-side to [i, f, o, g]
        i, f, o = sig[:, 0:H], sig[:, H:2 * H], sig[:, 2 * H:3 * H]
        g = th[:, 3 * H:4 * H]
        c_new = f * c + i * g
        return o * jnp.tanh(c_new), c_new

    def step_matmul(h0_v, h1_v):
        hcat = jnp.concatenate([h0_v, h1_v], axis=-1).astype(bf16)           # (B, 2H)
        return jnp.dot(hcat, wstep, preferred_element_type=f32)              # (B, 8H)

    zeros = jnp.zeros((B, H), f32)
    h0, c0, h1, c1 = zeros, zeros, zeros, zeros

    for t in range(S):
        # one MXU push gives layer-0 (time t) AND layer-1 (time t-1) gate pre-activations
        g_all = step_matmul(h0, h1) + pre_all[:, t, :]                       # (B, 256)
        sig = jax.nn.sigmoid(g_all)
        th = jnp.tanh(g_all)
        if t > 0:  # layer-1 time t-1 (consumes h0[t-1] = current h0, h1[t-2] = current h1)
            h1, c1 = cell(sig[:, G4:], th[:, G4:], c1)
            h1_scr[:, pl.ds(t - 1, 1), :] = h1[:, None, :]
        h0, c0 = cell(sig[:, :G4], th[:, :G4], c0)                           # layer-0 time t

    # layer-1 final step (time S-1)
    g1 = step_matmul(h0, h1)[:, G4:] + g_bias[G4:]
    h1, c1 = cell(jax.nn.sigmoid(g1), jnp.tanh(g1), c1)
    h1_scr[:, pl.ds(S - 1, 1), :] = h1[:, None, :]

    # ---- neck: Linear(H -> H//2) -> Linear(H//2 -> O), O zero-padded to 16 lanes ----
    h1_all = h1_scr[...].reshape(B * S, H)
    hid = jnp.dot(h1_all.astype(bf16), wn1, preferred_element_type=f32) + bn1
    logits = jnp.dot(hid.astype(bf16), wn2, preferred_element_type=f32) + bn2
    out_ref[...] = logits.reshape(B, S, H // 2).astype(out_ref.dtype)


def policy_forward_pallas(layer_info, prune_list, packed):
    """layer_info: (B,S,F_INFO), prune_list: (B,S). Returns logits (B, S, O)."""
    wemb, wmain, bias = packed
    prune3 = prune_list.reshape(B, S, 1)
    full = lambda a: pl.BlockSpec(a.shape, lambda i: (0,) * a.ndim)

    raw = pl.pallas_call(
        policy_kernel,
        out_shape=jax.ShapeDtypeStruct((B, S, H // 2), jnp.float32),
        grid_spec=pltpu.PrefetchScalarGridSpec(
            num_scalar_prefetch=0,
            grid=(1,),
            in_specs=[full(layer_info), full(prune3), full(wemb), full(wmain), full(bias)],
            out_specs=pl.BlockSpec((B, S, H // 2), lambda i: (0, 0, 0)),
            scratch_shapes=[pltpu.VMEM((B, S, H), jnp.float32)],
        ),
        compiler_params=pltpu.CompilerParams(dimension_semantics=("arbitrary",)),
    )(layer_info, prune3, wemb, wmain, bias)
    return raw[..., :O]                      # lane-clean kernel store; slice to O here (free)


policy_forward = jax.jit(policy_forward_pallas)


# =====================================================================================
# Host-side parameter creation (PyTorch layout) and packing for the kernel.
# =====================================================================================
def kaiming(key, shape, fan_in):
    return jax.random.normal(key, shape, jnp.float32) * math.sqrt(2.0 / fan_in)


def sinusoidal_pe(seq_len, dim):
    pos = jnp.arange(seq_len, dtype=jnp.float32)[:, None]
    i = jnp.arange(dim // 2, dtype=jnp.float32)[None, :]
    angle = pos / jnp.power(10000.0, 2.0 * i / dim)
    pe = jnp.zeros((seq_len, dim), jnp.float32)
    pe = pe.at[:, 0::2].set(jnp.sin(angle))
    pe = pe.at[:, 1::2].set(jnp.cos(angle))
    return pe


def make_params(key):
    ks = jax.random.split(key, 16)
    lim = 1.0 / math.sqrt(D)
    watt = jax.random.uniform(ks[0], (D, D), jnp.float32, -lim, lim)    # nn.Linear weight (out,in)
    batt = jax.random.uniform(ks[7], (D,), jnp.float32, -lim, lim)
    # LSTM: kaiming_normal weights, zero biases (per _init_weights)
    wih0 = kaiming(ks[1], (4 * H, D), D)
    whh0 = kaiming(ks[2], (4 * H, H), H)
    b0 = jnp.zeros((4 * H,), jnp.float32)
    wih1 = kaiming(ks[3], (4 * H, H), H)
    whh1 = kaiming(ks[4], (4 * H, H), H)
    b1 = jnp.zeros((4 * H,), jnp.float32)
    # neck: kaiming_normal weights; PyTorch-default-ish uniform biases
    wn1 = kaiming(ks[5], (H // 2, H), H)
    bn1 = jax.random.uniform(ks[8], (H // 2,), jnp.float32, -1 / math.sqrt(H), 1 / math.sqrt(H))
    wn2 = kaiming(ks[6], (O, H // 2), H // 2)
    bn2 = jax.random.uniform(ks[9], (O,), jnp.float32,
                             -1 / math.sqrt(H // 2), 1 / math.sqrt(H // 2))
    raw = (watt, batt, wih0, whh0, b0, wih1, whh1, b1, wn1, bn1, wn2, bn2)
    # embedding stand-in params
    w_info = kaiming(ks[10], (D, F_INFO), F_INFO)
    w_prune = kaiming(ks[11], (D, 1), 1)
    fuse_w = jnp.array([0.5, 0.5], jnp.float32)
    return raw, (w_info, w_prune, fuse_w)


def prepare_params(raw, embed_params):
    """Pre-transpose, permute LSTM gates [i,f,g,o]->[i,f,o,g], fold fuse weights, and pack."""
    (watt, batt, wih0, whh0, b0, wih1, whh1, b1, wn1, bn1, wn2, bn2) = raw
    w_info, w_prune, fuse_w = embed_params

    def reorder(w):  # permute 4H gate rows/entries from PyTorch [i, f, g, o] to [i, f, o, g]
        i, f, g, o = jnp.split(w, 4, axis=0)
        return jnp.concatenate([i, f, o, g], axis=0)

    z = lambda r, c: jnp.zeros((r, c), jnp.float32)

    # --- wmain: one bf16 (144, 256) weight slab; every in-kernel dot is `act @ view` ---
    wx_rows = jnp.concatenate([reorder(wih0).T, z(D, G4)], axis=1)                  # (32, 256)
    step_rows = jnp.concatenate(
        [jnp.concatenate([reorder(whh0).T, reorder(wih1).T], axis=1),
         jnp.concatenate([z(H, G4), reorder(whh1).T], axis=1)], axis=0)             # (64, 256)
    misc_rows = jnp.concatenate([watt.T, wn1.T, z(D, G8 - D - H // 2)], axis=1)     # (32, 256)
    wn2_rows = jnp.concatenate(
        [jnp.pad(wn2.T, ((0, 0), (0, H // 2 - O))), z(H // 2, G8 - H // 2)], axis=1)  # (16, 256)
    wmain = jnp.concatenate([wx_rows, step_rows, misc_rows, wn2_rows],
                            axis=0).astype(jnp.bfloat16)                            # (144, 256)

    # --- bias slab (f32): row 0 = per-step gate bias [b0 | b1]; row 1 = misc biases ---
    g_bias = jnp.concatenate([reorder(b0), reorder(b1)])                            # (256,)
    misc_b = jnp.concatenate([batt, bn1, jnp.pad(bn2, (0, H // 2 - O)),
                              jnp.zeros((G8 - D - H,), jnp.float32)])               # (256,)
    bias = jnp.stack([g_bias, misc_b], axis=0)                                      # (2, 256)

    # --- embedding slab (f32): fuse weights folded in; PE table appended ---
    wemb = jnp.concatenate([
        fuse_w[1] * w_info.T,                     # (4, 32)
        (fuse_w[0] * w_prune[:, 0])[None, :],     # (1, 32)
        sinusoidal_pe(S, D),                      # (8, 32)
        jnp.zeros((3, D), jnp.float32)], axis=0)  # pad to (16, 32)
    return wemb, wmain, bias


# =====================================================================================
# Pure-JAX reference (PyTorch semantics / gate order) for a correctness check.
# =====================================================================================
def get_input_embedding(layer_info, prune_list, embed_params):
    w_info, w_prune, fuse_w = embed_params
    layer_enc = jnp.einsum("bsf,df->bsd", layer_info, w_info)
    prune_enc = prune_list[..., None] * w_prune[:, 0][None, None, :]
    stacked = jnp.stack([prune_enc, layer_enc], axis=2)
    fused = jnp.einsum("bsfd,f->bsd", stacked, fuse_w)
    return fused + sinusoidal_pe(S, D)[None, :, :]


def policy_forward_ref(x, raw):
    (watt, batt, wih0, whh0, b0, wih1, whh1, b1, wn1, bn1, wn2, bn2) = raw
    xa = jnp.einsum("bsd,ed->bse", x, watt) + batt
    score = jnp.einsum("bsd,btd->bst", xa, xa) / math.sqrt(D)
    attn = jax.nn.softmax(score, axis=-1)
    ctx = jnp.einsum("bst,btd->bsd", attn, xa)

    def lstm_layer(inp, wih, whh, b):
        h = jnp.zeros((B, H), jnp.float32)
        c = jnp.zeros((B, H), jnp.float32)
        outs = []
        for t in range(S):
            g = inp[:, t, :] @ wih.T + h @ whh.T + b
            i = jax.nn.sigmoid(g[:, :H]); f = jax.nn.sigmoid(g[:, H:2 * H])
            gg = jnp.tanh(g[:, 2 * H:3 * H]); o = jax.nn.sigmoid(g[:, 3 * H:])
            c = f * c + i * gg
            h = o * jnp.tanh(c)
            outs.append(h)
        return jnp.stack(outs, axis=1)

    h0 = lstm_layer(ctx, wih0, whh0, b0)
    h1 = lstm_layer(h0, wih1, whh1, b1)
    hid = jnp.einsum("bsh,kh->bsk", h1, wn1) + bn1
    return jnp.einsum("bsk,ok->bso", hid, wn2) + bn2


if __name__ == "__main__":
    key = jax.random.PRNGKey(0)
    k_param, k_info, k_prune = jax.random.split(key, 3)

    raw_params, embed_params = make_params(k_param)
    packed_params = prepare_params(raw_params, embed_params)

    layer_info = jax.random.normal(k_info, (B, S, F_INFO), jnp.float32)
    prune_list = jax.random.uniform(k_prune, (B, S), jnp.float32)

    logits = policy_forward(layer_info, prune_list, packed_params)       # (B, S, O)
    logits = jax.block_until_ready(logits)

    x = get_input_embedding(layer_info, prune_list, embed_params)        # same stand-in as kernel
    ref = policy_forward_ref(x, raw_params)

    assert logits.shape == (B, S, O)
    assert bool(jnp.all(jnp.isfinite(logits)))
    assert bool(jnp.allclose(logits, ref, atol=5e-2, rtol=5e-2)), \
        float(jnp.max(jnp.abs(logits - ref)))
    print("KERNEL_OK")
</pallas_src>

<mosaic_0001>
module attributes {stable_mosaic.version = 11 : i64} {
  func.func @policy_kernel(%arg0: i32, %arg1: memref<2x8x4xf32, #tpu.memory_space<vmem>>, %arg2: memref<2x8x1xf32, #tpu.memory_space<vmem>>, %arg3: memref<16x32xf32, #tpu.memory_space<vmem>>, %arg4: memref<144x256xbf16, #tpu.memory_space<vmem>>, %arg5: memref<2x256xf32, #tpu.memory_space<vmem>>, %arg6: memref<2x8x16xf32, #tpu.memory_space<vmem>>, %arg7: memref<2x8x32xf32, #tpu.memory_space<vmem>>) attributes {dimension_semantics = [#tpu.dimension_semantics<arbitrary>], iteration_bounds = array<i64: 1>, scalar_prefetch = 0 : i64, scratch_operands = 1 : i64, tpu.core_type = #tpu.core_type<tc>, window_params = [{pipeline_mode = #tpu.pipeline_mode<synchronous>, transform_indices = @transform_0, window_bounds = array<i64: 2, 8, 4>}, {pipeline_mode = #tpu.pipeline_mode<synchronous>, transform_indices = @transform_1, window_bounds = array<i64: 2, 8, 1>}, {pipeline_mode = #tpu.pipeline_mode<synchronous>, transform_indices = @transform_2, window_bounds = array<i64: 16, 32>}, {pipeline_mode = #tpu.pipeline_mode<synchronous>, transform_indices = @transform_3, window_bounds = array<i64: 144, 256>}, {pipeline_mode = #tpu.pipeline_mode<synchronous>, transform_indices = @transform_4, window_bounds = array<i64: 2, 256>}, {pipeline_mode = #tpu.pipeline_mode<synchronous>, transform_indices = @transform_5, window_bounds = array<i64: 2, 8, 16>}]} {
    %c0 = arith.constant 0 : index
    %c0_0 = arith.constant 0 : index
    %0 = vector.load %arg3[%c0, %c0_0] : memref<16x32xf32, #tpu.memory_space<vmem>>, vector<4x32xf32>
    %c4 = arith.constant 4 : index
    %c0_1 = arith.constant 0 : index
    %1 = vector.load %arg3[%c4, %c0_1] : memref<16x32xf32, #tpu.memory_space<vmem>>, vector<1x32xf32>
    %2 = vector.shape_cast %1 : vector<1x32xf32> to vector<32xf32>
    %c5 = arith.constant 5 : index
    %c0_2 = arith.constant 0 : index
    %3 = vector.load %arg3[%c5, %c0_2] : memref<16x32xf32, #tpu.memory_space<vmem>>, vector<8x32xf32>
    %c0_3 = arith.constant 0 : index
    %c0_4 = arith.constant 0 : index
    %4 = vector.load %arg4[%c0_3, %c0_4] : memref<144x256xbf16, #tpu.memory_space<vmem>>, vector<32x256xbf16>
    %c32 = arith.constant 32 : index
    %c0_5 = arith.constant 0 : index
    %5 = vector.load %arg4[%c32, %c0_5] : memref<144x256xbf16, #tpu.memory_space<vmem>>, vector<64x256xbf16>
    %c96 = arith.constant 96 : index
    %c0_6 = arith.constant 0 : index
    %6 = vector.load %arg4[%c96, %c0_6] : memref<144x256xbf16, #tpu.memory_space<vmem>>, vector<32x32xbf16>
    %c96_7 = arith.constant 96 : index
    %c32_8 = arith.constant 32 : index
    %7 = vector.load %arg4[%c96_7, %c32_8] : memref<144x256xbf16, #tpu.memory_space<vmem>>, vector<32x16xbf16>
    %c128 = arith.constant 128 : index
    %c0_9 = arith.constant 0 : index
    %8 = vector.load %arg4[%c128, %c0_9] : memref<144x256xbf16, #tpu.memory_space<vmem>>, vector<16x16xbf16>
    %c0_10 = arith.constant 0 : index
    %c0_11 = arith.constant 0 : index
    %9 = vector.load %arg5[%c0_10, %c0_11] : memref<2x256xf32, #tpu.memory_space<vmem>>, vector<1x256xf32>
    %10 = vector.shape_cast %9 : vector<1x256xf32> to vector<256xf32>
    %c1 = arith.constant 1 : index
    %c0_12 = arith.constant 0 : index
    %11 = vector.load %arg5[%c1, %c0_12] : memref<2x256xf32, #tpu.memory_space<vmem>>, vector<1x32xf32>
    %12 = vector.shape_cast %11 : vector<1x32xf32> to vector<32xf32>
    %c1_13 = arith.constant 1 : index
    %c32_14 = arith.constant 32 : index
    %13 = vector.load %arg5[%c1_13, %c32_14] : memref<2x256xf32, #tpu.memory_space<vmem>>, vector<1x16xf32>
    %14 = vector.shape_cast %13 : vector<1x16xf32> to vector<16xf32>
    %c1_15 = arith.constant 1 : index
    %c48 = arith.constant 48 : index
    %15 = vector.load %arg5[%c1_15, %c48] : memref<2x256xf32, #tpu.memory_space<vmem>>, vector<1x16xf32>
    %16 = vector.shape_cast %15 : vector<1x16xf32> to vector<16xf32>
    %c0_16 = arith.constant 0 : index
    %c0_17 = arith.constant 0 : index
    %c0_18 = arith.constant 0 : index
    %17 = vector.load %arg1[%c0_16, %c0_17, %c0_18] : memref<2x8x4xf32, #tpu.memory_space<vmem>>, vector<2x8x4xf32>
    %c0_19 = arith.constant 0 : index
    %c0_20 = arith.constant 0 : index
    %c0_21 = arith.constant 0 : index
    %18 = vector.load %arg2[%c0_19, %c0_20, %c0_21] : memref<2x8x1xf32, #tpu.memory_space<vmem>>, vector<2x8x1xf32>
    %19 = vector.shape_cast %17 : vector<2x8x4xf32> to vector<16x4xf32>
    %cst = arith.constant dense<0.000000e+00> : vector<16x32xf32>
    %20 = tpu.matmul %19, %0, %cst {dimension_numbers = #tpu.dot_dimension_numbers<[1], [0], [0], [1], [0, 0, 1, 1], [], []>} : vector<16x4xf32>, vector<4x32xf32>, vector<16x32xf32> -> vector<16x32xf32>
    %21 = vector.shape_cast %20 : vector<16x32xf32> to vector<2x8x32xf32>
    %22 = vector.shape_cast %2 : vector<32xf32> to vector<1x1x32xf32>
    %23 = vector.broadcast %18 : vector<2x8x1xf32> to vector<2x8x32xf32>
    %24 = vector.broadcast %22 : vector<1x1x32xf32> to vector<2x8x32xf32>
    %25 = arith.mulf %23, %24 : vector<2x8x32xf32>
    %26 = arith.addf %21, %25 : vector<2x8x32xf32>
    %27 = vector.shape_cast %3 : vector<8x32xf32> to vector<1x8x32xf32>
    %28 = vector.broadcast %27 : vector<1x8x32xf32> to vector<2x8x32xf32>
    %29 = arith.addf %26, %28 : vector<2x8x32xf32>
    %30 = vector.shape_cast %29 : vector<2x8x32xf32> to vector<16x32xf32>
    %31 = arith.truncf %30 : vector<16x32xf32> to vector<16x32xbf16>
    %cst_22 = arith.constant dense<0.000000e+00> : vector<16x32xf32>
    %32 = tpu.matmul %31, %6, %cst_22 {dimension_numbers = #tpu.dot_dimension_numbers<[1], [0], [0], [1], [0, 0, 1, 1], [], []>} : vector<16x32xbf16>, vector<32x32xbf16>, vector<16x32xf32> -> vector<16x32xf32>
    %33 = vector.shape_cast %12 : vector<32xf32> to vector<1x32xf32>
    %34 = vector.broadcast %33 : vector<1x32xf32> to vector<16x32xf32>
    %35 = arith.addf %32, %34 : vector<16x32xf32>
    %36 = vector.shape_cast %35 : vector<16x32xf32> to vector<2x8x32xf32>
    %cst_23 = arith.constant dense<0.000000e+00> : vector<2x8x8xf32>
    %37 = tpu.matmul %36, %36, %cst_23 {dimension_numbers = #tpu.dot_dimension_numbers<[2], [2], [1], [1], [0, 0, 0, 1, 1, 1], [0], [0]>} : vector<2x8x32xf32>, vector<2x8x32xf32>, vector<2x8x8xf32> -> vector<2x8x8xf32>
    %cst_24 = arith.constant 0.176776692 : f32
    %38 = vector.broadcast %cst_24 : f32 to vector<2x8x8xf32>
    %39 = arith.mulf %37, %38 : vector<2x8x8xf32>
    %cst_25 = arith.constant dense<0xFF800000> : vector<2x8xf32>
    %40 = vector.multi_reduction <maximumf>, %39, %cst_25 [2] : vector<2x8x8xf32> to vector<2x8xf32>
    %41 = vector.shape_cast %40 : vector<2x8xf32> to vector<2x8x1xf32>
    %42 = vector.broadcast %41 : vector<2x8x1xf32> to vector<2x8x8xf32>
    %43 = arith.subf %39, %42 : vector<2x8x8xf32>
    %44 = math.exp %43 : vector<2x8x8xf32>
    %cst_26 = arith.constant dense<0.000000e+00> : vector<2x8xf32>
    %45 = vector.multi_reduction <add>, %44, %cst_26 [2] : vector<2x8x8xf32> to vector<2x8xf32>
    %46 = vector.shape_cast %45 : vector<2x8xf32> to vector<2x8x1xf32>
    %47 = tpu.reciprocal %46 {approx = true} : vector<2x8x1xf32> -> vector<2x8x1xf32>
    %48 = vector.broadcast %47 : vector<2x8x1xf32> to vector<2x8x8xf32>
    %49 = arith.mulf %44, %48 : vector<2x8x8xf32>
    %cst_27 = arith.constant dense<0.000000e+00> : vector<2x8x32xf32>
    %50 = tpu.matmul %49, %36, %cst_27 {dimension_numbers = #tpu.dot_dimension_numbers<[2], [1], [1], [2], [0, 0, 0, 1, 1, 2], [0], [0]>} : vector<2x8x8xf32>, vector<2x8x32xf32>, vector<2x8x32xf32> -> vector<2x8x32xf32>
    %51 = vector.shape_cast %50 : vector<2x8x32xf32> to vector<16x32xf32>
    %52 = arith.truncf %51 : vector<16x32xf32> to vector<16x32xbf16>
    %cst_28 = arith.constant dense<0.000000e+00> : vector<16x256xf32>
    %53 = tpu.matmul %52, %4, %cst_28 {dimension_numbers = #tpu.dot_dimension_numbers<[1], [0], [0], [1], [0, 0, 1, 1], [], []>} : vector<16x32xbf16>, vector<32x256xbf16>, vector<16x256xf32> -> vector<16x256xf32>
    %54 = vector.shape_cast %10 : vector<256xf32> to vector<1x256xf32>
    %55 = vector.broadcast %54 : vector<1x256xf32> to vector<16x256xf32>
    %56 = arith.addf %53, %55 : vector<16x256xf32>
    %57 = vector.shape_cast %56 : vector<16x256xf32> to vector<2x8x256xf32>
    %cst_29 = arith.constant 0.000000e+00 : f32
    %58 = vector.broadcast %cst_29 : f32 to vector<2x32xf32>
    %59 = tpu.concatenate %58, %58 in 1 : vector<2x32xf32>, vector<2x32xf32> -> vector<2x64xf32>
    %60 = arith.truncf %59 : vector<2x64xf32> to vector<2x64xbf16>
    %cst_30 = arith.constant dense<0.000000e+00> : vector<2x256xf32>
    %61 = tpu.matmul %60, %5, %cst_30 {dimension_numbers = #tpu.dot_dimension_numbers<[1], [0], [0], [1], [0, 0, 1, 1], [], []>} : vector<2x64xbf16>, vector<64x256xbf16>, vector<2x256xf32> -> vector<2x256xf32>
    %62 = vector.extract_strided_slice %57 {offsets = [0, 0, 0], sizes = [2, 1, 256], strides = [1, 1, 1]} : vector<2x8x256xf32> to vector<2x1x256xf32>
    %63 = vector.shape_cast %62 : vector<2x1x256xf32> to vector<2x256xf32>
    %64 = arith.addf %61, %63 : vector<2x256xf32>
    %65 = arith.negf %64 : vector<2x256xf32>
    %66 = math.exp %65 : vector<2x256xf32>
    %cst_31 = arith.constant 1.000000e+00 : f32
    %67 = vector.broadcast %cst_31 : f32 to vector<2x256xf32>
    %68 = arith.addf %67, %66 : vector<2x256xf32>
    %69 = arith.divf %67, %68 : vector<2x256xf32>
    %70 = math.tanh %64 : vector<2x256xf32>
    %71 = vector.extract_strided_slice %69 {offsets = [0, 0], sizes = [2, 128], strides = [1, 1]} : vector<2x256xf32> to vector<2x128xf32>
    %72 = vector.extract_strided_slice %70 {offsets = [0, 0], sizes = [2, 128], strides = [1, 1]} : vector<2x256xf32> to vector<2x128xf32>
    %73 = vector.extract_strided_slice %71 {offsets = [0, 0], sizes = [2, 32], strides = [1, 1]} : vector<2x128xf32> to vector<2x32xf32>
    %74 = vector.extract_strided_slice %71 {offsets = [0, 32], sizes = [2, 32], strides = [1, 1]} : vector<2x128xf32> to vector<2x32xf32>
    %75 = vector.extract_strided_slice %71 {offsets = [0, 64], sizes = [2, 32], strides = [1, 1]} : vector<2x128xf32> to vector<2x32xf32>
    %76 = vector.extract_strided_slice %72 {offsets = [0, 96], sizes = [2, 32], strides = [1, 1]} : vector<2x128xf32> to vector<2x32xf32>
    %77 = arith.mulf %74, %58 : vector<2x32xf32>
    %78 = arith.mulf %73, %76 : vector<2x32xf32>
    %79 = arith.addf %77, %78 : vector<2x32xf32>
    %80 = math.tanh %79 : vector<2x32xf32>
    %81 = arith.mulf %75, %80 : vector<2x32xf32>
    %82 = tpu.concatenate %81, %58 in 1 : vector<2x32xf32>, vector<2x32xf32> -> vector<2x64xf32>
    %83 = arith.truncf %82 : vector<2x64xf32> to vector<2x64xbf16>
    %cst_32 = arith.constant dense<0.000000e+00> : vector<2x256xf32>
    %84 = tpu.matmul %83, %5, %cst_32 {dimension_numbers = #tpu.dot_dimension_numbers<[1], [0], [0], [1], [0, 0, 1, 1], [], []>} : vector<2x64xbf16>, vector<64x256xbf16>, vector<2x256xf32> -> vector<2x256xf32>
    %85 = vector.extract_strided_slice %57 {offsets = [0, 1, 0], sizes = [2, 1, 256], strides = [1, 1, 1]} : vector<2x8x256xf32> to vector<2x1x256xf32>
    %86 = vector.shape_cast %85 : vector<2x1x256xf32> to vector<2x256xf32>
    %87 = arith.addf %84, %86 : vector<2x256xf32>
    %88 = arith.negf %87 : vector<2x256xf32>
    %89 = math.exp %88 : vector<2x256xf32>
    %cst_33 = arith.constant 1.000000e+00 : f32
    %90 = vector.broadcast %cst_33 : f32 to vector<2x256xf32>
    %91 = arith.addf %90, %89 : vector<2x256xf32>
    %92 = arith.divf %90, %91 : vector<2x256xf32>
    %93 = math.tanh %87 : vector<2x256xf32>
    %94 = vector.extract_strided_slice %92 {offsets = [0, 128], sizes = [2, 128], strides = [1, 1]} : vector<2x256xf32> to vector<2x128xf32>
    %95 = vector.extract_strided_slice %93 {offsets = [0, 128], sizes = [2, 128], strides = [1, 1]} : vector<2x256xf32> to vector<2x128xf32>
    %96 = vector.extract_strided_slice %94 {offsets = [0, 0], sizes = [2, 32], strides = [1, 1]} : vector<2x128xf32> to vector<2x32xf32>
    %97 = vector.extract_strided_slice %94 {offsets = [0, 32], sizes = [2, 32], strides = [1, 1]} : vector<2x128xf32> to vector<2x32xf32>
    %98 = vector.extract_strided_slice %94 {offsets = [0, 64], sizes = [2, 32], strides = [1, 1]} : vector<2x128xf32> to vector<2x32xf32>
    %99 = vector.extract_strided_slice %95 {offsets = [0, 96], sizes = [2, 32], strides = [1, 1]} : vector<2x128xf32> to vector<2x32xf32>
    %100 = arith.mulf %97, %58 : vector<2x32xf32>
    %101 = arith.mulf %96, %99 : vector<2x32xf32>
    %102 = arith.addf %100, %101 : vector<2x32xf32>
    %103 = math.tanh %102 : vector<2x32xf32>
    %104 = arith.mulf %98, %103 : vector<2x32xf32>
    %105 = vector.shape_cast %104 : vector<2x32xf32> to vector<2x1x32xf32>
    %c0_34 = arith.constant 0 : index
    %c0_35 = arith.constant 0 : index
    %c0_36 = arith.constant 0 : index
    %106 = vector.load %arg7[%c0_34, %c0_35, %c0_36] : memref<2x8x32xf32, #tpu.memory_space<vmem>>, vector<2x1x32xf32>
    tpu.vector_store %arg7[%c0_34, %c0_35, %c0_36], %105 {strides = array<i32>} : memref<2x8x32xf32, #tpu.memory_space<vmem>>, vector<2x1x32xf32>,
    %107 = vector.extract_strided_slice %92 {offsets = [0, 0], sizes = [2, 128], strides = [1, 1]} : vector<2x256xf32> to vector<2x128xf32>
    %108 = vector.extract_strided_slice %93 {offsets = [0, 0], sizes = [2, 128], strides = [1, 1]} : vector<2x256xf32> to vector<2x128xf32>
    %109 = vector.extract_strided_slice %107 {offsets = [0, 0], sizes = [2, 32], strides = [1, 1]} : vector<2x128xf32> to vector<2x32xf32>
    %110 = vector.extract_strided_slice %107 {offsets = [0, 32], sizes = [2, 32], strides = [1, 1]} : vector<2x128xf32> to vector<2x32xf32>
    %111 = vector.extract_strided_slice %107 {offsets = [0, 64], sizes = [2, 32], strides = [1, 1]} : vector<2x128xf32> to vector<2x32xf32>
    %112 = vector.extract_strided_slice %108 {offsets = [0, 96], sizes = [2, 32], strides = [1, 1]} : vector<2x128xf32> to vector<2x32xf32>
    %113 = arith.mulf %110, %79 : vector<2x32xf32>
    %114 = arith.mulf %109, %112 : vector<2x32xf32>
    %115 = arith.addf %113, %114 : vector<2x32xf32>
    %116 = math.tanh %115 : vector<2x32xf32>
    %117 = arith.mulf %111, %116 : vector<2x32xf32>
    %118 = tpu.concatenate %117, %104 in 1 : vector<2x32xf32>, vector<2x32xf32> -> vector<2x64xf32>
    %119 = arith.truncf %118 : vector<2x64xf32> to vector<2x64xbf16>
    %cst_37 = arith.constant dense<0.000000e+00> : vector<2x256xf32>
    %120 = tpu.matmul %119, %5, %cst_37 {dimension_numbers = #tpu.dot_dimension_numbers<[1], [0], [0], [1], [0, 0, 1, 1], [], []>} : vector<2x64xbf16>, vector<64x256xbf16>, vector<2x256xf32> -> vector<2x256xf32>
    %121 = vector.extract_strided_slice %57 {offsets = [0, 2, 0], sizes = [2, 1, 256], strides = [1, 1, 1]} : vector<2x8x256xf32> to vector<2x1x256xf32>
    %122 = vector.shape_cast %121 : vector<2x1x256xf32> to vector<2x256xf32>
    %123 = arith.addf %120, %122 : vector<2x256xf32>
    %124 = arith.negf %123 : vector<2x256xf32>
    %125 = math.exp %124 : vector<2x256xf32>
    %cst_38 = arith.constant 1.000000e+00 : f32
    %126 = vector.broadcast %cst_38 : f32 to vector<2x256xf32>
    %127 = arith.addf %126, %125 : vector<2x256xf32>
    %128 = arith.divf %126, %127 : vector<2x256xf32>
    %129 = math.tanh %123 : vector<2x256xf32>
    %130 = vector.extract_strided_slice %128 {offsets = [0, 128], sizes = [2, 128], strides = [1, 1]} : vector<2x256xf32> to vector<2x128xf32>
    %131 = vector.extract_strided_slice %129 {offsets = [0, 128], sizes = [2, 128], strides = [1, 1]} : vector<2x256xf32> to vector<2x128xf32>
    %132 = vector.extract_strided_slice %130 {offsets = [0, 0], sizes = [2, 32], strides = [1, 1]} : vector<2x128xf32> to vector<2x32xf32>
    %133 = vector.extract_strided_slice %130 {offsets = [0, 32], sizes = [2, 32], strides = [1, 1]} : vector<2x128xf32> to vector<2x32xf32>
    %134 = vector.extract_strided_slice %130 {offsets = [0, 64], sizes = [2, 32], strides = [1, 1]} : vector<2x128xf32> to vector<2x32xf32>
    %135 = vector.extract_strided_slice %131 {offsets = [0, 96], sizes = [2, 32], strides = [1, 1]} : vector<2x128xf32> to vector<2x32xf32>
    %136 = arith.mulf %133, %102 : vector<2x32xf32>
    %137 = arith.mulf %132, %135 : vector<2x32xf32>
    %138 = arith.addf %136, %137 : vector<2x32xf32>
    %139 = math.tanh %138 : vector<2x32xf32>
    %140 = arith.mulf %134, %139 : vector<2x32xf32>
    %141 = vector.shape_cast %140 : vector<2x32xf32> to vector<2x1x32xf32>
    %c0_39 = arith.constant 0 : index
    %c1_40 = arith.constant 1 : index
    %c0_41 = arith.constant 0 : index
    %142 = vector.load %arg7[%c0_39, %c1_40, %c0_41] : memref<2x8x32xf32, #tpu.memory_space<vmem>>, vector<2x1x32xf32>
    tpu.vector_store %arg7[%c0_39, %c1_40, %c0_41], %141 {strides = array<i32>} : memref<2x8x32xf32, #tpu.memory_space<vmem>>, vector<2x1x32xf32>,
    %143 = vector.extract_strided_slice %128 {offsets = [0, 0], sizes = [2, 128], strides = [1, 1]} : vector<2x256xf32> to vector<2x128xf32>
    %144 = vector.extract_strided_slice %129 {offsets = [0, 0], sizes = [2, 128], strides = [1, 1]} : vector<2x256xf32> to vector<2x128xf32>
    %145 = vector.extract_strided_slice %143 {offsets = [0, 0], sizes = [2, 32], strides = [1, 1]} : vector<2x128xf32> to vector<2x32xf32>
    %146 = vector.extract_strided_slice %143 {offsets = [0, 32], sizes = [2, 32], strides = [1, 1]} : vector<2x128xf32> to vector<2x32xf32>
    %147 = vector.extract_strided_slice %143 {offsets = [0, 64], sizes = [2, 32], strides = [1, 1]} : vector<2x128xf32> to vector<2x32xf32>
    %148 = vector.extract_strided_slice %144 {offsets = [0, 96], sizes = [2, 32], strides = [1, 1]} : vector<2x128xf32> to vector<2x32xf32>
    %149 = arith.mulf %146, %115 : vector<2x32xf32>
    %150 = arith.mulf %145, %148 : vector<2x32xf32>
    %151 = arith.addf %149, %150 : vector<2x32xf32>
    %152 = math.tanh %151 : vector<2x32xf32>
    %153 = arith.mulf %147, %152 : vector<2x32xf32>
    %154 = tpu.concatenate %153, %140 in 1 : vector<2x32xf32>, vector<2x32xf32> -> vector<2x64xf32>
    %155 = arith.truncf %154 : vector<2x64xf32> to vector<2x64xbf16>
    %cst_42 = arith.constant dense<0.000000e+00> : vector<2x256xf32>
    %156 = tpu.matmul %155, %5, %cst_42 {dimension_numbers = #tpu.dot_dimension_numbers<[1], [0], [0], [1], [0, 0, 1, 1], [], []>} : vector<2x64xbf16>, vector<64x256xbf16>, vector<2x256xf32> -> vector<2x256xf32>
    %157 = vector.extract_strided_slice %57 {offsets = [0, 3, 0], sizes = [2, 1, 256], strides = [1, 1, 1]} : vector<2x8x256xf32> to vector<2x1x256xf32>
    %158 = vector.shape_cast %157 : vector<2x1x256xf32> to vector<2x256xf32>
    %159 = arith.addf %156, %158 : vector<2x256xf32>
    %160 = arith.negf %159 : vector<2x256xf32>
    %161 = math.exp %160 : vector<2x256xf32>
    %cst_43 = arith.constant 1.000000e+00 : f32
    %162 = vector.broadcast %cst_43 : f32 to vector<2x256xf32>
    %163 = arith.addf %162, %161 : vector<2x256xf32>
    %164 = arith.divf %162, %163 : vector<2x256xf32>
    %165 = math.tanh %159 : vector<2x256xf32>
    %166 = vector.extract_strided_slice %164 {offsets = [0, 128], sizes = [2, 128], strides = [1, 1]} : vector<2x256xf32> to vector<2x128xf32>
    %167 = vector.extract_strided_slice %165 {offsets = [0, 128], sizes = [2, 128], strides = [1, 1]} : vector<2x256xf32> to vector<2x128xf32>
    %168 = vector.extract_strided_slice %166 {offsets = [0, 0], sizes = [2, 32], strides = [1, 1]} : vector<2x128xf32> to vector<2x32xf32>
    %169 = vector.extract_strided_slice %166 {offsets = [0, 32], sizes = [2, 32], strides = [1, 1]} : vector<2x128xf32> to vector<2x32xf32>
    %170 = vector.extract_strided_slice %166 {offsets = [0, 64], sizes = [2, 32], strides = [1, 1]} : vector<2x128xf32> to vector<2x32xf32>
    %171 = vector.extract_strided_slice %167 {offsets = [0, 96], sizes = [2, 32], strides = [1, 1]} : vector<2x128xf32> to vector<2x32xf32>
    %172 = arith.mulf %169, %138 : vector<2x32xf32>
    %173 = arith.mulf %168, %171 : vector<2x32xf32>
    %174 = arith.addf %172, %173 : vector<2x32xf32>
    %175 = math.tanh %174 : vector<2x32xf32>
    %176 = arith.mulf %170, %175 : vector<2x32xf32>
    %177 = vector.shape_cast %176 : vector<2x32xf32> to vector<2x1x32xf32>
    %c0_44 = arith.constant 0 : index
    %c2 = arith.constant 2 : index
    %c0_45 = arith.constant 0 : index
    %178 = vector.load %arg7[%c0_44, %c2, %c0_45] : memref<2x8x32xf32, #tpu.memory_space<vmem>>, vector<2x1x32xf32>
    tpu.vector_store %arg7[%c0_44, %c2, %c0_45], %177 {strides = array<i32>} : memref<2x8x32xf32, #tpu.memory_space<vmem>>, vector<2x1x32xf32>,
    %179 = vector.extract_strided_slice %164 {offsets = [0, 0], sizes = [2, 128], strides = [1, 1]} : vector<2x256xf32> to vector<2x128xf32>
    %180 = vector.extract_strided_slice %165 {offsets = [0, 0], sizes = [2, 128], strides = [1, 1]} : vector<2x256xf32> to vector<2x128xf32>
    %181 = vector.extract_strided_slice %179 {offsets = [0, 0], sizes = [2, 32], strides = [1, 1]} : vector<2x128xf32> to vector<2x32xf32>
    %182 = vector.extract_strided_slice %179 {offsets = [0, 32], sizes = [2, 32], strides = [1, 1]} : vector<2x128xf32> to vector<2x32xf32>
    %183 = vector.extract_strided_slice %179 {offsets = [0, 64], sizes = [2, 32], strides = [1, 1]} : vector<2x128xf32> to vector<2x32xf32>
    %184 = vector.extract_strided_slice %180 {offsets = [0, 96], sizes = [2, 32], strides = [1, 1]} : vector<2x128xf32> to vector<2x32xf32>
    %185 = arith.mulf %182, %151 : vector<2x32xf32>
    %186 = arith.mulf %181, %184 : vector<2x32xf32>
    %187 = arith.addf %185, %186 : vector<2x32xf32>
    %188 = math.tanh %187 : vector<2x32xf32>
    %189 = arith.mulf %183, %188 : vector<2x32xf32>
    %190 = tpu.concatenate %189, %176 in 1 : vector<2x32xf32>, vector<2x32xf32> -> vector<2x64xf32>
    %191 = arith.truncf %190 : vector<2x64xf32> to vector<2x64xbf16>
    %cst_46 = arith.constant dense<0.000000e+00> : vector<2x256xf32>
    %192 = tpu.matmul %191, %5, %cst_46 {dimension_numbers = #tpu.dot_dimension_numbers<[1], [0], [0], [1], [0, 0, 1, 1], [], []>} : vector<2x64xbf16>, vector<64x256xbf16>, vector<2x256xf32> -> vector<2x256xf32>
    %193 = vector.extract_strided_slice %57 {offsets = [0, 4, 0], sizes = [2, 1, 256], strides = [1, 1, 1]} : vector<2x8x256xf32> to vector<2x1x256xf32>
    %194 = vector.shape_cast %193 : vector<2x1x256xf32> to vector<2x256xf32>
    %195 = arith.addf %192, %194 : vector<2x256xf32>
    %196 = arith.negf %195 : vector<2x256xf32>
    %197 = math.exp %196 : vector<2x256xf32>
    %cst_47 = arith.constant 1.000000e+00 : f32
    %198 = vector.broadcast %cst_47 : f32 to vector<2x256xf32>
    %199 = arith.addf %198, %197 : vector<2x256xf32>
    %200 = arith.divf %198, %199 : vector<2x256xf32>
    %201 = math.tanh %195 : vector<2x256xf32>
    %202 = vector.extract_strided_slice %200 {offsets = [0, 128], sizes = [2, 128], strides = [1, 1]} : vector<2x256xf32> to vector<2x128xf32>
    %203 = vector.extract_strided_slice %201 {offsets = [0, 128], sizes = [2, 128], strides = [1, 1]} : vector<2x256xf32> to vector<2x128xf32>
    %204 = vector.extract_strided_slice %202 {offsets = [0, 0], sizes = [2, 32], strides = [1, 1]} : vector<2x128xf32> to vector<2x32xf32>
    %205 = vector.extract_strided_slice %202 {offsets = [0, 32], sizes = [2, 32], strides = [1, 1]} : vector<2x128xf32> to vector<2x32xf32>
    %206 = vector.extract_strided_slice %202 {offsets = [0, 64], sizes = [2, 32], strides = [1, 1]} : vector<2x128xf32> to vector<2x32xf32>
    %207 = vector.extract_strided_slice %203 {offsets = [0, 96], sizes = [2, 32], strides = [1, 1]} : vector<2x128xf32> to vector<2x32xf32>
    %208 = arith.mulf %205, %174 : vector<2x32xf32>
    %209 = arith.mulf %204, %207 : vector<2x32xf32>
    %210 = arith.addf %208, %209 : vector<2x32xf32>
    %211 = math.tanh %210 : vector<2x32xf32>
    %212 = arith.mulf %206, %211 : vector<2x32xf32>
    %213 = vector.shape_cast %212 : vector<2x32xf32> to vector<2x1x32xf32>
    %c0_48 = arith.constant 0 : index
    %c3 = arith.constant 3 : index
    %c0_49 = arith.constant 0 : index
    %214 = vector.load %arg7[%c0_48, %c3, %c0_49] : memref<2x8x32xf32, #tpu.memory_space<vmem>>, vector<2x1x32xf32>
    tpu.vector_store %arg7[%c0_48, %c3, %c0_49], %213 {strides = array<i32>} : memref<2x8x32xf32, #tpu.memory_space<vmem>>, vector<2x1x32xf32>,
    %215 = vector.extract_strided_slice %200 {offsets = [0, 0], sizes = [2, 128], strides = [1, 1]} : vector<2x256xf32> to vector<2x128xf32>
    %216 = vector.extract_strided_slice %201 {offsets = [0, 0], sizes = [2, 128], strides = [1, 1]} : vector<2x256xf32> to vector<2x128xf32>
    %217 = vector.extract_strided_slice %215 {offsets = [0, 0], sizes = [2, 32], strides = [1, 1]} : vector<2x128xf32> to vector<2x32xf32>
    %218 = vector.extract_strided_slice %215 {offsets = [0, 32], sizes = [2, 32], strides = [1, 1]} : vector<2x128xf32> to vector<2x32xf32>
    %219 = vector.extract_strided_slice %215 {offsets = [0, 64], sizes = [2, 32], strides = [1, 1]} : vector<2x128xf32> to vector<2x32xf32>
    %220 = vector.extract_strided_slice %216 {offsets = [0, 96], sizes = [2, 32], strides = [1, 1]} : vector<2x128xf32> to vector<2x32xf32>
    %221 = arith.mulf %218, %187 : vector<2x32xf32>
    %222 = arith.mulf %217, %220 : vector<2x32xf32>
    %223 = arith.addf %221, %222 : vector<2x32xf32>
    %224 = math.tanh %223 : vector<2x32xf32>
    %225 = arith.mulf %219, %224 : vector<2x32xf32>
    %226 = tpu.concatenate %225, %212 in 1 : vector<2x32xf32>, vector<2x32xf32> -> vector<2x64xf32>
    %227 = arith.truncf %226 : vector<2x64xf32> to vector<2x64xbf16>
    %cst_50 = arith.constant dense<0.000000e+00> : vector<2x256xf32>
    %228 = tpu.matmul %227, %5, %cst_50 {dimension_numbers = #tpu.dot_dimension_numbers<[1], [0], [0], [1], [0, 0, 1, 1], [], []>} : vector<2x64xbf16>, vector<64x256xbf16>, vector<2x256xf32> -> vector<2x256xf32>
    %229 = vector.extract_strided_slice %57 {offsets = [0, 5, 0], sizes = [2, 1, 256], strides = [1, 1, 1]} : vector<2x8x256xf32> to vector<2x1x256xf32>
    %230 = vector.shape_cast %229 : vector<2x1x256xf32> to vector<2x256xf32>
    %231 = arith.addf %228, %230 : vector<2x256xf32>
    %232 = arith.negf %231 : vector<2x256xf32>
    %233 = math.exp %232 : vector<2x256xf32>
    %cst_51 = arith.constant 1.000000e+00 : f32
    %234 = vector.broadcast %cst_51 : f32 to vector<2x256xf32>
    %235 = arith.addf %234, %233 : vector<2x256xf32>
    %236 = arith.divf %234, %235 : vector<2x256xf32>
    %237 = math.tanh %231 : vector<2x256xf32>
    %238 = vector.extract_strided_slice %236 {offsets = [0, 128], sizes = [2, 128], strides = [1, 1]} : vector<2x256xf32> to vector<2x128xf32>
    %239 = vector.extract_strided_slice %237 {offsets = [0, 128], sizes = [2, 128], strides = [1, 1]} : vector<2x256xf32> to vector<2x128xf32>
    %240 = vector.extract_strided_slice %238 {offsets = [0, 0], sizes = [2, 32], strides = [1, 1]} : vector<2x128xf32> to vector<2x32xf32>
    %241 = vector.extract_strided_slice %238 {offsets = [0, 32], sizes = [2, 32], strides = [1, 1]} : vector<2x128xf32> to vector<2x32xf32>
    %242 = vector.extract_strided_slice %238 {offsets = [0, 64], sizes = [2, 32], strides = [1, 1]} : vector<2x128xf32> to vector<2x32xf32>
    %243 = vector.extract_strided_slice %239 {offsets = [0, 96], sizes = [2, 32], strides = [1, 1]} : vector<2x128xf32> to vector<2x32xf32>
    %244 = arith.mulf %241, %210 : vector<2x32xf32>
    %245 = arith.mulf %240, %243 : vector<2x32xf32>
    %246 = arith.addf %244, %245 : vector<2x32xf32>
    %247 = math.tanh %246 : vector<2x32xf32>
    %248 = arith.mulf %242, %247 : vector<2x32xf32>
    %249 = vector.shape_cast %248 : vector<2x32xf32> to vector<2x1x32xf32>
    %c0_52 = arith.constant 0 : index
    %c4_53 = arith.constant 4 : index
    %c0_54 = arith.constant 0 : index
    %250 = vector.load %arg7[%c0_52, %c4_53, %c0_54] : memref<2x8x32xf32, #tpu.memory_space<vmem>>, vector<2x1x32xf32>
    tpu.vector_store %arg7[%c0_52, %c4_53, %c0_54], %249 {strides = array<i32>} : memref<2x8x32xf32, #tpu.memory_space<vmem>>, vector<2x1x32xf32>,
    %251 = vector.extract_strided_slice %236 {offsets = [0, 0], sizes = [2, 128], strides = [1, 1]} : vector<2x256xf32> to vector<2x128xf32>
    %252 = vector.extract_strided_slice %237 {offsets = [0, 0], sizes = [2, 128], strides = [1, 1]} : vector<2x256xf32> to vector<2x128xf32>
    %253 = vector.extract_strided_slice %251 {offsets = [0, 0], sizes = [2, 32], strides = [1, 1]} : vector<2x128xf32> to vector<2x32xf32>
    %254 = vector.extract_strided_slice %251 {offsets = [0, 32], sizes = [2, 32], strides = [1, 1]} : vector<2x128xf32> to vector<2x32xf32>
    %255 = vector.extract_strided_slice %251 {offsets = [0, 64], sizes = [2, 32], strides = [1, 1]} : vector<2x128xf32> to vector<2x32xf32>
    %256 = vector.extract_strided_slice %252 {offsets = [0, 96], sizes = [2, 32], strides = [1, 1]} : vector<2x128xf32> to vector<2x32xf32>
    %257 = arith.mulf %254, %223 : vector<2x32xf32>
    %258 = arith.mulf %253, %256 : vector<2x32xf32>
    %259 = arith.addf %257, %258 : vector<2x32xf32>
    %260 = math.tanh %259 : vector<2x32xf32>
    %261 = arith.mulf %255, %260 : vector<2x32xf32>
    %262 = tpu.concatenate %261, %248 in 1 : vector<2x32xf32>, vector<2x32xf32> -> vector<2x64xf32>
    %263 = arith.truncf %262 : vector<2x64xf32> to vector<2x64xbf16>
    %cst_55 = arith.constant dense<0.000000e+00> : vector<2x256xf32>
    %264 = tpu.matmul %263, %5, %cst_55 {dimension_numbers = #tpu.dot_dimension_numbers<[1], [0], [0], [1], [0, 0, 1, 1], [], []>} : vector<2x64xbf16>, vector<64x256xbf16>, vector<2x256xf32> -> vector<2x256xf32>
    %265 = vector.extract_strided_slice %57 {offsets = [0, 6, 0], sizes = [2, 1, 256], strides = [1, 1, 1]} : vector<2x8x256xf32> to vector<2x1x256xf32>
    %266 = vector.shape_cast %265 : vector<2x1x256xf32> to vector<2x256xf32>
    %267 = arith.addf %264, %266 : vector<2x256xf32>
    %268 = arith.negf %267 : vector<2x256xf32>
    %269 = math.exp %268 : vector<2x256xf32>
    %cst_56 = arith.constant 1.000000e+00 : f32
    %270 = vector.broadcast %cst_56 : f32 to vector<2x256xf32>
    %271 = arith.addf %270, %269 : vector<2x256xf32>
    %272 = arith.divf %270, %271 : vector<2x256xf32>
    %273 = math.tanh %267 : vector<2x256xf32>
    %274 = vector.extract_strided_slice %272 {offsets = [0, 128], sizes = [2, 128], strides = [1, 1]} : vector<2x256xf32> to vector<2x128xf32>
    %275 = vector.extract_strided_slice %273 {offsets = [0, 128], sizes = [2, 128], strides = [1, 1]} : vector<2x256xf32> to vector<2x128xf32>
    %276 = vector.extract_strided_slice %274 {offsets = [0, 0], sizes = [2, 32], strides = [1, 1]} : vector<2x128xf32> to vector<2x32xf32>
    %277 = vector.extract_strided_slice %274 {offsets = [0, 32], sizes = [2, 32], strides = [1, 1]} : vector<2x128xf32> to vector<2x32xf32>
    %278 = vector.extract_strided_slice %274 {offsets = [0, 64], sizes = [2, 32], strides = [1, 1]} : vector<2x128xf32> to vector<2x32xf32>
    %279 = vector.extract_strided_slice %275 {offsets = [0, 96], sizes = [2, 32], strides = [1, 1]} : vector<2x128xf32> to vector<2x32xf32>
    %280 = arith.mulf %277, %246 : vector<2x32xf32>
    %281 = arith.mulf %276, %279 : vector<2x32xf32>
    %282 = arith.addf %280, %281 : vector<2x32xf32>
    %283 = math.tanh %282 : vector<2x32xf32>
    %284 = arith.mulf %278, %283 : vector<2x32xf32>
    %285 = vector.shape_cast %284 : vector<2x32xf32> to vector<2x1x32xf32>
    %c0_57 = arith.constant 0 : index
    %c5_58 = arith.constant 5 : index
    %c0_59 = arith.constant 0 : index
    %286 = vector.load %arg7[%c0_57, %c5_58, %c0_59] : memref<2x8x32xf32, #tpu.memory_space<vmem>>, vector<2x1x32xf32>
    tpu.vector_store %arg7[%c0_57, %c5_58, %c0_59], %285 {strides = array<i32>} : memref<2x8x32xf32, #tpu.memory_space<vmem>>, vector<2x1x32xf32>,
    %287 = vector.extract_strided_slice %272 {offsets = [0, 0], sizes = [2, 128], strides = [1, 1]} : vector<2x256xf32> to vector<2x128xf32>
    %288 = vector.extract_strided_slice %273 {offsets = [0, 0], sizes = [2, 128], strides = [1, 1]} : vector<2x256xf32> to vector<2x128xf32>
    %289 = vector.extract_strided_slice %287 {offsets = [0, 0], sizes = [2, 32], strides = [1, 1]} : vector<2x128xf32> to vector<2x32xf32>
    %290 = vector.extract_strided_slice %287 {offsets = [0, 32], sizes = [2, 32], strides = [1, 1]} : vector<2x128xf32> to vector<2x32xf32>
    %291 = vector.extract_strided_slice %287 {offsets = [0, 64], sizes = [2, 32], strides = [1, 1]} : vector<2x128xf32> to vector<2x32xf32>
    %292 = vector.extract_strided_slice %288 {offsets = [0, 96], sizes = [2, 32], strides = [1, 1]} : vector<2x128xf32> to vector<2x32xf32>
    %293 = arith.mulf %290, %259 : vector<2x32xf32>
    %294 = arith.mulf %289, %292 : vector<2x32xf32>
    %295 = arith.addf %293, %294 : vector<2x32xf32>
    %296 = math.tanh %295 : vector<2x32xf32>
    %297 = arith.mulf %291, %296 : vector<2x32xf32>
    %298 = tpu.concatenate %297, %284 in 1 : vector<2x32xf32>, vector<2x32xf32> -> vector<2x64xf32>
    %299 = arith.truncf %298 : vector<2x64xf32> to vector<2x64xbf16>
    %cst_60 = arith.constant dense<0.000000e+00> : vector<2x256xf32>
    %300 = tpu.matmul %299, %5, %cst_60 {dimension_numbers = #tpu.dot_dimension_numbers<[1], [0], [0], [1], [0, 0, 1, 1], [], []>} : vector<2x64xbf16>, vector<64x256xbf16>, vector<2x256xf32> -> vector<2x256xf32>
    %301 = vector.extract_strided_slice %57 {offsets = [0, 7, 0], sizes = [2, 1, 256], strides = [1, 1, 1]} : vector<2x8x256xf32> to vector<2x1x256xf32>
    %302 = vector.shape_cast %301 : vector<2x1x256xf32> to vector<2x256xf32>
    %303 = arith.addf %300, %302 : vector<2x256xf32>
    %304 = arith.negf %303 : vector<2x256xf32>
    %305 = math.exp %304 : vector<2x256xf32>
    %cst_61 = arith.constant 1.000000e+00 : f32
    %306 = vector.broadcast %cst_61 : f32 to vector<2x256xf32>
    %307 = arith.addf %306, %305 : vector<2x256xf32>
    %308 = arith.divf %306, %307 : vector<2x256xf32>
    %309 = math.tanh %303 : vector<2x256xf32>
    %310 = vector.extract_strided_slice %308 {offsets = [0, 128], sizes = [2, 128], strides = [1, 1]} : vector<2x256xf32> to vector<2x128xf32>
    %311 = vector.extract_strided_slice %309 {offsets = [0, 128], sizes = [2, 128], strides = [1, 1]} : vector<2x256xf32> to vector<2x128xf32>
    %312 = vector.extract_strided_slice %310 {offsets = [0, 0], sizes = [2, 32], strides = [1, 1]} : vector<2x128xf32> to vector<2x32xf32>
    %313 = vector.extract_strided_slice %310 {offsets = [0, 32], sizes = [2, 32], strides = [1, 1]} : vector<2x128xf32> to vector<2x32xf32>
    %314 = vector.extract_strided_slice %310 {offsets = [0, 64], sizes = [2, 32], strides = [1, 1]} : vector<2x128xf32> to vector<2x32xf32>
    %315 = vector.extract_strided_slice %311 {offsets = [0, 96], sizes = [2, 32], strides = [1, 1]} : vector<2x128xf32> to vector<2x32xf32>
    %316 = arith.mulf %313, %282 : vector<2x32xf32>
    %317 = arith.mulf %312, %315 : vector<2x32xf32>
    %318 = arith.addf %316, %317 : vector<2x32xf32>
    %319 = math.tanh %318 : vector<2x32xf32>
    %320 = arith.mulf %314, %319 : vector<2x32xf32>
    %321 = vector.shape_cast %320 : vector<2x32xf32> to vector<2x1x32xf32>
    %c0_62 = arith.constant 0 : index
    %c6 = arith.constant 6 : index
    %c0_63 = arith.constant 0 : index
    %322 = vector.load %arg7[%c0_62, %c6, %c0_63] : memref<2x8x32xf32, #tpu.memory_space<vmem>>, vector<2x1x32xf32>
    tpu.vector_store %arg7[%c0_62, %c6, %c0_63], %321 {strides = array<i32>} : memref<2x8x32xf32, #tpu.memory_space<vmem>>, vector<2x1x32xf32>,
    %323 = vector.extract_strided_slice %308 {offsets = [0, 0], sizes = [2, 128], strides = [1, 1]} : vector<2x256xf32> to vector<2x128xf32>
    %324 = vector.extract_strided_slice %309 {offsets = [0, 0], sizes = [2, 128], strides = [1, 1]} : vector<2x256xf32> to vector<2x128xf32>
    %325 = vector.extract_strided_slice %323 {offsets = [0, 0], sizes = [2, 32], strides = [1, 1]} : vector<2x128xf32> to vector<2x32xf32>
    %326 = vector.extract_strided_slice %323 {offsets = [0, 32], sizes = [2, 32], strides = [1, 1]} : vector<2x128xf32> to vector<2x32xf32>
    %327 = vector.extract_strided_slice %323 {offsets = [0, 64], sizes = [2, 32], strides = [1, 1]} : vector<2x128xf32> to vector<2x32xf32>
    %328 = vector.extract_strided_slice %324 {offsets = [0, 96], sizes = [2, 32], strides = [1, 1]} : vector<2x128xf32> to vector<2x32xf32>
    %329 = arith.mulf %326, %295 : vector<2x32xf32>
    %330 = arith.mulf %325, %328 : vector<2x32xf32>
    %331 = arith.addf %329, %330 : vector<2x32xf32>
    %332 = math.tanh %331 : vector<2x32xf32>
    %333 = arith.mulf %327, %332 : vector<2x32xf32>
    %334 = tpu.concatenate %333, %320 in 1 : vector<2x32xf32>, vector<2x32xf32> -> vector<2x64xf32>
    %335 = arith.truncf %334 : vector<2x64xf32> to vector<2x64xbf16>
    %cst_64 = arith.constant dense<0.000000e+00> : vector<2x256xf32>
    %336 = tpu.matmul %335, %5, %cst_64 {dimension_numbers = #tpu.dot_dimension_numbers<[1], [0], [0], [1], [0, 0, 1, 1], [], []>} : vector<2x64xbf16>, vector<64x256xbf16>, vector<2x256xf32> -> vector<2x256xf32>
    %337 = vector.extract_strided_slice %336 {offsets = [0, 128], sizes = [2, 128], strides = [1, 1]} : vector<2x256xf32> to vector<2x128xf32>
    %338 = vector.extract_strided_slice %10 {offsets = [128], sizes = [128], strides = [1]} : vector<256xf32> to vector<128xf32>
    %339 = vector.shape_cast %338 : vector<128xf32> to vector<1x128xf32>
    %340 = vector.broadcast %339 : vector<1x128xf32> to vector<2x128xf32>
    %341 = arith.addf %337, %340 : vector<2x128xf32>
    %342 = arith.negf %341 : vector<2x128xf32>
    %343 = math.exp %342 : vector<2x128xf32>
    %cst_65 = arith.constant 1.000000e+00 : f32
    %344 = vector.broadcast %cst_65 : f32 to vector<2x128xf32>
    %345 = arith.addf %344, %343 : vector<2x128xf32>
    %346 = arith.divf %344, %345 : vector<2x128xf32>
    %347 = math.tanh %341 : vector<2x128xf32>
    %348 = vector.extract_strided_slice %346 {offsets = [0, 0], sizes = [2, 32], strides = [1, 1]} : vector<2x128xf32> to vector<2x32xf32>
    %349 = vector.extract_strided_slice %346 {offsets = [0, 32], sizes = [2, 32], strides = [1, 1]} : vector<2x128xf32> to vector<2x32xf32>
    %350 = vector.extract_strided_slice %346 {offsets = [0, 64], sizes = [2, 32], strides = [1, 1]} : vector<2x128xf32> to vector<2x32xf32>
    %351 = vector.extract_strided_slice %347 {offsets = [0, 96], sizes = [2, 32], strides = [1, 1]} : vector<2x128xf32> to vector<2x32xf32>
    %352 = arith.mulf %349, %318 : vector<2x32xf32>
    %353 = arith.mulf %348, %351 : vector<2x32xf32>
    %354 = arith.addf %352, %353 : vector<2x32xf32>
    %355 = math.tanh %354 : vector<2x32xf32>
    %356 = arith.mulf %350, %355 : vector<2x32xf32>
    %357 = vector.shape_cast %356 : vector<2x32xf32> to vector<2x1x32xf32>
    %c0_66 = arith.constant 0 : index
    %c7 = arith.constant 7 : index
    %c0_67 = arith.constant 0 : index
    %358 = vector.load %arg7[%c0_66, %c7, %c0_67] : memref<2x8x32xf32, #tpu.memory_space<vmem>>, vector<2x1x32xf32>
    tpu.vector_store %arg7[%c0_66, %c7, %c0_67], %357 {strides = array<i32>} : memref<2x8x32xf32, #tpu.memory_space<vmem>>, vector<2x1x32xf32>,
    %c0_68 = arith.constant 0 : index
    %c0_69 = arith.constant 0 : index
    %c0_70 = arith.constant 0 : index
    %359 = vector.load %arg7[%c0_68, %c0_69, %c0_70] : memref<2x8x32xf32, #tpu.memory_space<vmem>>, vector<2x8x32xf32>
    %360 = vector.shape_cast %359 : vector<2x8x32xf32> to vector<16x32xf32>
    %361 = arith.truncf %360 : vector<16x32xf32> to vector<16x32xbf16>
    %cst_71 = arith.constant dense<0.000000e+00> : vector<16x16xf32>
    %362 = tpu.matmul %361, %7, %cst_71 {dimension_numbers = #tpu.dot_dimension_numbers<[1], [0], [0], [1], [0, 0, 1, 1], [], []>} : vector<16x32xbf16>, vector<32x16xbf16>, vector<16x16xf32> -> vector<16x16xf32>
    %363 = vector.shape_cast %14 : vector<16xf32> to vector<1x16xf32>
    %364 = vector.broadcast %363 : vector<1x16xf32> to vector<16x16xf32>
    %365 = arith.addf %362, %364 : vector<16x16xf32>
    %366 = arith.truncf %365 : vector<16x16xf32> to vector<16x16xbf16>
    %cst_72 = arith.constant dense<0.000000e+00> : vector<16x16xf32>
    %367 = tpu.matmul %366, %8, %cst_72 {dimension_numbers = #tpu.dot_dimension_numbers<[1], [0], [0], [1], [0, 0, 1, 1], [], []>} : vector<16x16xbf16>, vector<16x16xbf16>, vector<16x16xf32> -> vector<16x16xf32>
    %368 = vector.shape_cast %16 : vector<16xf32> to vector<1x16xf32>
    %369 = vector.broadcast %368 : vector<1x16xf32> to vector<16x16xf32>
    %370 = arith.addf %367, %369 : vector<16x16xf32>
    %371 = vector.shape_cast %370 : vector<16x16xf32> to vector<2x8x16xf32>
    %c0_73 = arith.constant 0 : index
    %c0_74 = arith.constant 0 : index
    %c0_75 = arith.constant 0 : index
    %372 = vector.load %arg6[%c0_73, %c0_74, %c0_75] : memref<2x8x16xf32, #tpu.memory_space<vmem>>, vector<2x8x16xf32>
    tpu.vector_store %arg6[%c0_73, %c0_74, %c0_75], %371 {strides = array<i32>} : memref<2x8x16xf32, #tpu.memory_space<vmem>>, vector<2x8x16xf32>,
    return
  }
  func.func @transform_0(%arg0: i32) -> (i32, i32, i32) {
    %c0_i32 = arith.constant 0 : i32
    %c0_i32_0 = arith.constant 0 : i32
    %c0_i32_1 = arith.constant 0 : i32
    %c0_i32_2 = arith.constant 0 : i32
    return %c0_i32, %c0_i32_0, %c0_i32_1 : i32, i32, i32
  }
  func.func @transform_1(%arg0: i32) -> (i32, i32, i32) {
    %c0_i32 = arith.constant 0 : i32
    %c0_i32_0 = arith.constant 0 : i32
    %c0_i32_1 = arith.constant 0 : i32
    %c0_i32_2 = arith.constant 0 : i32
    return %c0_i32, %c0_i32_0, %c0_i32_1 : i32, i32, i32
  }
  func.func @transform_2(%arg0: i32) -> (i32, i32) {
    %c0_i32 = arith.constant 0 : i32
    %c0_i32_0 = arith.constant 0 : i32
    %c0_i32_1 = arith.constant 0 : i32
    return %c0_i32, %c0_i32_0 : i32, i32
  }
  func.func @transform_3(%arg0: i32) -> (i32, i32) {
    %c0_i32 = arith.constant 0 : i32
    %c0_i32_0 = arith.constant 0 : i32
    %c0_i32_1 = arith.constant 0 : i32
    return %c0_i32, %c0_i32_0 : i32, i32
  }
  func.func @transform_4(%arg0: i32) -> (i32, i32) {
    %c0_i32 = arith.constant 0 : i32
    %c0_i32_0 = arith.constant 0 : i32
    %c0_i32_1 = arith.constant 0 : i32
    return %c0_i32, %c0_i32_0 : i32, i32
  }
  func.func @transform_5(%arg0: i32) -> (i32, i32, i32) {
    %c0_i32 = arith.constant 0 : i32
    %c0_i32_0 = arith.constant 0 : i32
    %c0_i32_1 = arith.constant 0 : i32
    %c0_i32_2 = arith.constant 0 : i32
    return %c0_i32, %c0_i32_0, %c0_i32_1 : i32, i32, i32
  }
}

</mosaic_0001>

<llo_original>
// kernel: policy_forward_pallas.1
$region0: #{policy_forward_pallas.1}
  #allocation0 [shape = 'u32[]', space=smem, size = 0x4, offset = 0x4, fixed_abs, tag = 'smem constant byte address 0x4 - core index']
  #allocation1 [shape = 'u32[144,128]{1,0:T(1,128)}', space=vmem, size = 0x12000, scoped, tag = 'internal scratch']
  #allocation2 [shape = 'f32[2,8,32]{2,1,0:T(8,128)}', space=vmem, size = 0x2000, scoped, tag = 'scratch operand']
  %s0 = inlined_call_operand.vmem [shape: f32[2,8,4], index: 0, kind: input, shape index: {}]
  %s1 = inlined_call_operand.vmem [shape: f32[2,8,1], index: 1, kind: input, shape index: {}]
  %s2 = inlined_call_operand.vmem [shape: f32[16,32], index: 2, kind: input, shape index: {}]
  %s3 = inlined_call_operand.hbm [shape: bf16[144,256], index: 3, kind: input, shape index: {}]
  %s4 = inlined_call_operand.vmem [shape: f32[2,256], index: 4, kind: input, shape index: {}]
  %s5 = inlined_call_operand.hbm [shape: f32[2,8,16], index: 5, kind: output, shape index: {}]
  %s6 = sld [smem:[#allocation0]]
  $region34: #{policy_forward_pallas.1} parent=0
    _
  %s8 = ssub.s32 1, %s6
  %s9 = scalar_select 0, %s8, %s6
  $region1: #{policy_forward_pallas.1} parent=0
    #allocation3 [shape = 'u8[73728]{0}', space=vmem, size = 0x12000, scoped, tag = 'input window, operand 3, single buffered']
    #allocation4 [shape = 's32[1]{0}', space=sflag, size = 0x4, scoped, tag = 'scoped memory for policy_forward_pallas.1']
    #allocation5 [shape = 's32[1]{0}', space=sflag, size = 0x4, scoped, tag = 'scoped memory for policy_forward_pallas.1']
    #allocation6 [shape = 'u8[8192]{0}', space=vmem, size = 0x2000, scoped, tag = 'output window, operand 0, single buffered']
    %10 = vsyncpa [#allocation4], 0
    %11 = vsyncpa [#allocation5], 0
    // Predicated region
    $region2: #{policy_forward_pallas.1} parent=1 // pred_check
      _
    $region3: #{policy_forward_pallas.1} parent=1 // pred_check_branch
      %13 = sbr.rel (0) target = $region5
    $region4: #{policy_forward_pallas.1} parent=1 // pred_region
      _
    $region5: #{policy_forward_pallas.1} parent=1 // pred_fallthru
      _
    // Predicated region
    $region6: #{policy_forward_pallas.1} parent=1 // pred_check
      _
    $region7: #{policy_forward_pallas.1} parent=1 // pred_check_branch
      %15 = sbr.rel (0) target = $region9
    $region8: #{policy_forward_pallas.1} parent=1 // pred_region
      _
    $region9: #{policy_forward_pallas.1} parent=1 // pred_fallthru
      _
    // Predicated region
    $region10: #{policy_forward_pallas.1} parent=1 // pred_check
      _
    $region11: #{policy_forward_pallas.1} parent=1 // pred_check_branch
      %17 = sbr.rel (0) target = $region13
    $region12: #{policy_forward_pallas.1} parent=1 // pred_region
      _
    $region13: #{policy_forward_pallas.1} parent=1 // pred_fallthru
      _
    // Predicated region
    $region14: #{policy_forward_pallas.1} parent=1 // pred_check
      _
    $region15: #{policy_forward_pallas.1} parent=1 // pred_check_branch
      %19 = sbr.rel (0) target = $region17
    $region16: #{policy_forward_pallas.1} parent=1 // pred_region
      %s21 = ssub.s32 2304, 2304
      %22 = vsyncadd [#allocation4], %s21
      %s23 = sshll.u32 [#allocation3], 4
      %s24 = int_to_ptr.vmem [resolvable:$true] %s23
      %29 = dma.hbm_to_vmem [thread:$0]  %s3, 2304, %s24, [#allocation4], 128, 128, 8
    $region17: #{policy_forward_pallas.1} parent=1 // pred_fallthru
      _
    // Predicated region
    $region18: #{policy_forward_pallas.1} parent=1 // pred_check
      _
    $region19: #{policy_forward_pallas.1} parent=1 // pred_check_branch
      %31 = sbr.rel (0) target = $region21
    $region20: #{policy_forward_pallas.1} parent=1 // pred_region
      _
    $region21: #{policy_forward_pallas.1} parent=1 // pred_fallthru
      _
    // Predicated region
    $region22: #{policy_forward_pallas.1} parent=1 // pred_check
      _
    $region23: #{policy_forward_pallas.1} parent=1 // pred_check_branch
      %33 = sbr.rel (0) target = $region25
    $region24: #{policy_forward_pallas.1} parent=1 // pred_region
      %34 = dma.done [#allocation4], 2304
    $region25: #{policy_forward_pallas.1} parent=1 // pred_fallthru
      _
    %v36 = vld [vmem:[%s2] sm:$0xf]
    %v37 = vld [vmem:[%s2 + $0x4] sm:$0x1]
    %v38 = vld [vmem:[%s2 + $0x5] sm:$0xff]
    %v39 = vld [vmem:[#allocation3] sm:$0xff]
    %v40 = vld [vmem:[#allocation3 + $0x8] sm:$0xff]
    %v41 = vld [vmem:[#allocation3 + $0x10] sm:$0xff]
    %v42 = vld [vmem:[#allocation3 + $0x18] sm:$0xff]
    %v43 = vld [vmem:[#allocation3 + $0x20] sm:$0xff]
    %v44 = vld [vmem:[#allocation3 + $0x28] sm:$0xff]
    %v45 = vld [vmem:[#allocation3 + $0x30] sm:$0xff]
    %v46 = vld [vmem:[#allocation3 + $0x38] sm:$0xff]
    %v47 = vld [vmem:[#allocation3 + $0x40] sm:$0xff]
    %v48 = vld [vmem:[#allocation3 + $0x48] sm:$0xff]
    %v49 = vld [vmem:[#allocation3 + $0x50] sm:$0xff]
    %v50 = vld [vmem:[#allocation3 + $0x58] sm:$0xff]
    %v51 = vld [vmem:[#allocation3 + $0x60] sm:$0xf]
    %v52 = vld [vmem:[#allocation3 + $0x68] sm:$0xf]
    %v53 = vld [vmem:[#allocation3 + $0x70] sm:$0xf]
    %v54 = vld [vmem:[#allocation3 + $0x78] sm:$0xf]
    %v55 = vld [vmem:[#allocation3 + $0x80] sm:$0xf]
    %v56 = vld [vmem:[#allocation3 + $0x88] sm:$0xf]
    %v57 = vld [vmem:[%s4] ss:$2 sm:$0x3]
    %v58 = vld [vmem:[%s4 + $0x1] sm:$0x1]
    %v59 = vld [vmem:[%s0] sm:$0xff]
    %v60 = vld [vmem:[%s0 + $0x8] sm:$0xff]
    %v61 = vld [vmem:[%s1] sm:$0xff]
    %v62 = vld [vmem:[%s1 + $0x8] sm:$0xff]
    %vm63 = vcmask 31744
    %v65 = vsel %vm63, %v59, 0
    %v68 = vsel %vm63, %v60, 0
    %vm70 = vcmask 1043456
    %v72 = vsel %vm70, %v36, 0
    %74 = vmatprep.subr.mxu0 0.0
    %75 = vmatpush1.msra.mxu0 %v72
    %76 = vmatprep.subr.mxu0 0.0
    %77 = vmatpush1.msra.mxu0 0.0
    %78 = vmatprep.subr.mxu0 0.0
    %79 = vmatpush1.msra.mxu0 0.0
    %80 = vmatprep.subr.mxu0 0.0
    %81 = vmatpush1.msra.mxu0 0.0
    %82 = vmatprep.subr.mxu0 0.0
    %83 = vmatpush1.msra.mxu0 0.0
    %84 = vmatprep.subr.mxu0 0.0
    %85 = vmatpush1.msra.mxu0 0.0
    %86 = vmatprep.subr.mxu0 0.0
    %87 = vmatpush1.msra.mxu0 0.0
    %88 = vmatprep.subr.mxu0 0.0
    %89 = vmatpush1.msra.mxu0 0.0
    %90 = vmatprep.subr.mxu0 0.0
    %91 = vmatpush1.msra.mxu0 0.0
    %92 = vmatprep.subr.mxu0 0.0
    %93 = vmatpush1.msra.mxu0 0.0
    %94 = vmatprep.subr.mxu0 0.0
    %95 = vmatpush1.msra.mxu0 0.0
    %96 = vmatprep.subr.mxu0 0.0
    %97 = vmatpush1.msra.mxu0 0.0
    %98 = vmatprep.subr.mxu0 0.0
    %99 = vmatpush1.msra.mxu0 0.0
    %100 = vmatprep.subr.mxu0 0.0
    %101 = vmatpush1.msra.mxu0 0.0
    %102 = vmatprep.subr.mxu0 0.0
    %103 = vmatpush1.msra.mxu0 0.0
    %104 = vmatprep.subr.mxu0 0.0
    %105 = vmatpush1.msra.mxu0 0.0
    %106 = vmatprep.subr.mxu0 0.0
    %107 = vmatpush1.msra.mxu0 0.0
    %108 = vmatprep.subr.mxu0 0.0
    %109 = vmatpush1.msra.mxu0 0.0
    %110 = vmatprep.subr.mxu0 0.0
    %111 = vmatpush1.msra.mxu0 0.0
    %112 = vmatprep.subr.mxu0 0.0
    %113 = vmatpush1.msra.mxu0 0.0
    %114 = vmatprep.subr.mxu0 0.0
    %115 = vmatpush1.msra.mxu0 0.0
    %116 = vmatprep.subr.mxu0 0.0
    %117 = vmatpush1.msra.mxu0 0.0
    %118 = vmatprep.subr.mxu0 0.0
    %119 = vmatpush1.msra.mxu0 0.0
    %120 = vmatprep.subr.mxu0 0.0
    %121 = vmatpush1.msra.mxu0 0.0
    %122 = vmatprep.subr.mxu0 0.0
    %123 = vmatpush1.msra.mxu0 0.0
    %124 = vmatprep.subr.mxu0 0.0
    %125 = vmatpush1.msra.mxu0 0.0
    %126 = vmatprep.subr.mxu0 0.0
    %127 = vmatpush1.msra.mxu0 0.0
    %128 = vmatprep.subr.mxu0 0.0
    %129 = vmatpush1.msra.mxu0 0.0
    %130 = vmatprep.subr.mxu0 0.0
    %131 = vmatpush1.msra.mxu0 0.0
    %132 = vmatprep.subr.mxu0 0.0
    %133 = vmatpush1.msra.mxu0 0.0
    %134 = vmatprep.subr.mxu0 0.0
    %135 = vmatpush1.msra.mxu0 0.0
    %136 = vmatprep.subr.mxu0 0.0
    %137 = vmatpush1.msra.mxu0 0.0
    %138 = vmatprep.mubr.f32.mxu0 0.0
    %139 = vmatmul.mubr.f32.gmra.mrb[0].mxu0 %v65
    %v140 = vpop.f32.mrb[0].mxu0
    %v141 = vadd.f32 0.0, %v140
    %v142 = vpop.f32.mrb[0].mxu0
    %143 = vmatprep.mubr.f32.mxu0 0.0
    %144 = vmatmul.mubr.f32.gmra.mrb[0].mxu0 %v68
    %v145 = vpop.f32.mrb[0].mxu0
    %v146 = vadd.f32 0.0, %v145
    %v147 = vpop.f32.mrb[0].mxu0
    %148 = vdwg.mxu0
    %150 = vset.pattern.permute.xlu0 0
    %151 = vperm.xlu0 %150, %v61
    %v152 = vpop.permute.xlu0 %151
    %155 = vset.pattern.permute.xlu0 0
    %156 = vperm.xlu0 %155, %v62
    %v157 = vpop.permute.xlu0 %156
    %v159 = vlaneseq
    %v160 = vshrl.u32 %v159, 7
    %v161 = vsub.s32 0, %v160
    %v162 = vrot.slane %v37, %v161
    %v163 = vmul.f32 %v152, %v162
    %v164 = vmul.f32 %v157, %v162
    %v165 = vadd.f32 %v141, %v163
    %v166 = vadd.f32 %v146, %v164
    %v167 = vadd.f32 %v165, %v38
    %v168 = vadd.f32 %v166, %v38
    %v169 = vpack.c.bf16 %v168, %v167
    %v170 = vlaneseq
    %v171 = vshrl.u32 %v170, 7
    %v172 = vsub.s32 0, %v171
    %v173 = vrot.slane %v58, %v172
    %v178 = vunpack.c.l.b16 %v51
    %v179 = vunpack.c.l.b16 %v52
    %v180 = vunpack.c.l.b16 %v53
    %v181 = vunpack.c.l.b16 %v54
    %v182 = vpack.c.b16 %v179, %v178
    %v183 = vpack.c.b16 %v181, %v180
    %vm186 = vcmask 261120
    %v188 = vsel %vm186, %v169, 0
    %190 = vmatprep.subr.bf16.mxu0 0
    %191 = vmatpush1.bf16.msra.mxu0 %v182
    %192 = vmatprep.subr.bf16.mxu0 0
    %193 = vmatpush1.bf16.msra.mxu0 %v183
    %194 = vmatprep.subr.bf16.mxu0 0
    %195 = vmatpush1.bf16.msra.mxu0 0
    %196 = vmatprep.subr.bf16.mxu0 0
    %197 = vmatpush1.bf16.msra.mxu0 0
    %198 = vmatprep.subr.bf16.mxu0 0
    %199 = vmatpush1.bf16.msra.mxu0 0
    %200 = vmatprep.subr.bf16.mxu0 0
    %201 = vmatpush1.bf16.msra.mxu0 0
    %202 = vmatprep.subr.bf16.mxu0 0
    %203 = vmatpush1.bf16.msra.mxu0 0
    %204 = vmatprep.subr.bf16.mxu0 0
    %205 = vmatpush1.bf16.msra.mxu0 0
    %206 = vmatprep.subr.bf16.mxu0 0
    %207 = vmatpush1.bf16.msra.mxu0 0
    %208 = vmatprep.subr.bf16.mxu0 0
    %209 = vmatpush1.bf16.msra.mxu0 0
    %210 = vmatprep.subr.bf16.mxu0 0
    %211 = vmatpush1.bf16.msra.mxu0 0
    %212 = vmatprep.subr.bf16.mxu0 0
    %213 = vmatpush1.bf16.msra.mxu0 0
    %214 = vmatprep.subr.bf16.mxu0 0
    %215 = vmatpush1.bf16.msra.mxu0 0
    %216 = vmatprep.subr.bf16.mxu0 0
    %217 = vmatpush1.bf16.msra.mxu0 0
    %218 = vmatprep.subr.bf16.mxu0 0
    %219 = vmatpush1.bf16.msra.mxu0 0
    %220 = vmatprep.subr.bf16.mxu0 0
    %221 = vmatpush1.bf16.msra.mxu0 0
    %222 = vmatprep.mubr.bf16.mxu0 0
    %223 = vmatmul.mubr.bf16.gmra.mrb[0].mxu0 %v188
    %v224 = vpop.f32.mrb[0].mxu0
    %v225 = vadd.f32 %v173, %v224
    %v226 = vpop.f32.mrb[0].mxu0
    %v227 = vpop.f32.mrb[0].mxu0
    %v228 = vadd.f32 %v173, %v227
    %v229 = vpop.f32.mrb[0].mxu0
    %230 = vdwg.mxu0
    %v232 = vsel %vm186, %v225, 0
    %234 = vmatprep.subr.mxu0 0.0
    %235 = vmatpush1.xpose.msra.mxu0 %v232
    %236 = vmatprep.subr.mxu0 0.0
    %237 = vmatpush1.xpose.msra.mxu0 0.0
    %238 = vmatprep.subr.mxu0 0.0
    %239 = vmatpush1.xpose.msra.mxu0 0.0
    %240 = vmatprep.subr.mxu0 0.0
    %241 = vmatpush1.xpose.msra.mxu0 0.0
    %242 = vmatprep.subr.mxu0 0.0
    %243 = vmatpush1.xpose.msra.mxu0 0.0
    %244 = vmatprep.subr.mxu0 0.0
    %245 = vmatpush1.xpose.msra.mxu0 0.0
    %246 = vmatprep.subr.mxu0 0.0
    %247 = vmatpush1.xpose.msra.mxu0 0.0
    %248 = vmatprep.subr.mxu0 0.0
    %249 = vmatpush1.xpose.msra.mxu0 0.0
    %250 = vmatprep.subr.mxu0 0.0
    %251 = vmatpush1.xpose.msra.mxu0 0.0
    %252 = vmatprep.subr.mxu0 0.0
    %253 = vmatpush1.xpose.msra.mxu0 0.0
    %254 = vmatprep.subr.mxu0 0.0
    %255 = vmatpush1.xpose.msra.mxu0 0.0
    %256 = vmatprep.subr.mxu0 0.0
    %257 = vmatpush1.xpose.msra.mxu0 0.0
    %258 = vmatprep.subr.mxu0 0.0
    %259 = vmatpush1.xpose.msra.mxu0 0.0
    %260 = vmatprep.subr.mxu0 0.0
    %261 = vmatpush1.xpose.msra.mxu0 0.0
    %262 = vmatprep.subr.mxu0 0.0
    %263 = vmatpush1.xpose.msra.mxu0 0.0
    %264 = vmatprep.subr.mxu0 0.0
    %265 = vmatpush1.xpose.msra.mxu0 0.0
    %266 = vmatprep.subr.mxu0 0.0
    %267 = vmatpush1.xpose.msra.mxu0 0.0
    %268 = vmatprep.subr.mxu0 0.0
    %269 = vmatpush1.xpose.msra.mxu0 0.0
    %270 = vmatprep.subr.mxu0 0.0
    %271 = vmatpush1.xpose.msra.mxu0 0.0
    %272 = vmatprep.subr.mxu0 0.0
    %273 = vmatpush1.xpose.msra.mxu0 0.0
    %274 = vmatprep.subr.mxu0 0.0
    %275 = vmatpush1.xpose.msra.mxu0 0.0
    %276 = vmatprep.subr.mxu0 0.0
    %277 = vmatpush1.xpose.msra.mxu0 0.0
    %278 = vmatprep.subr.mxu0 0.0
    %279 = vmatpush1.xpose.msra.mxu0 0.0
    %280 = vmatprep.subr.mxu0 0.0
    %281 = vmatpush1.xpose.msra.mxu0 0.0
    %282 = vmatprep.subr.mxu0 0.0
    %283 = vmatpush1.xpose.msra.mxu0 0.0
    %284 = vmatprep.subr.mxu0 0.0
    %285 = vmatpush1.xpose.msra.mxu0 0.0
    %286 = vmatprep.subr.mxu0 0.0
    %287 = vmatpush1.xpose.msra.mxu0 0.0
    %288 = vmatprep.subr.mxu0 0.0
    %289 = vmatpush1.xpose.msra.mxu0 0.0
    %290 = vmatprep.subr.mxu0 0.0
    %291 = vmatpush1.xpose.msra.mxu0 0.0
    %292 = vmatprep.subr.mxu0 0.0
    %293 = vmatpush1.xpose.msra.mxu0 0.0
    %294 = vmatprep.subr.mxu0 0.0
    %295 = vmatpush1.xpose.msra.mxu0 0.0
    %296 = vmatprep.subr.mxu0 0.0
    %297 = vmatpush1.xpose.msra.mxu0 0.0
    %298 = vmatprep.mubr.f32.mxu0 0.0
    %299 = vmatmul.mubr.f32.gmra.mrb[0].mxu0 %v232
    %v300 = vpop.f32.mrb[0].mxu0
    %v301 = vadd.f32 0.0, %v300
    %v302 = vpop.f32.mrb[0].mxu0
    %303 = vdwg.mxu0
    %v305 = vsel %vm186, %v228, 0
    %307 = vmatprep.subr.mxu0 0.0
    %308 = vmatpush1.xpose.msra.mxu0 %v305
    %309 = vmatprep.subr.mxu0 0.0
    %310 = vmatpush1.xpose.msra.mxu0 0.0
    %311 = vmatprep.subr.mxu0 0.0
    %312 = vmatpush1.xpose.msra.mxu0 0.0
    %313 = vmatprep.subr.mxu0 0.0
    %314 = vmatpush1.xpose.msra.mxu0 0.0
    %315 = vmatprep.subr.mxu0 0.0
    %316 = vmatpush1.xpose.msra.mxu0 0.0
    %317 = vmatprep.subr.mxu0 0.0
    %318 = vmatpush1.xpose.msra.mxu0 0.0
    %319 = vmatprep.subr.mxu0 0.0
    %320 = vmatpush1.xpose.msra.mxu0 0.0
    %321 = vmatprep.subr.mxu0 0.0
    %322 = vmatpush1.xpose.msra.mxu0 0.0
    %323 = vmatprep.subr.mxu0 0.0
    %324 = vmatpush1.xpose.msra.mxu0 0.0
    %325 = vmatprep.subr.mxu0 0.0
    %326 = vmatpush1.xpose.msra.mxu0 0.0
    %327 = vmatprep.subr.mxu0 0.0
    %328 = vmatpush1.xpose.msra.mxu0 0.0
    %329 = vmatprep.subr.mxu0 0.0
    %330 = vmatpush1.xpose.msra.mxu0 0.0
    %331 = vmatprep.subr.mxu0 0.0
    %332 = vmatpush1.xpose.msra.mxu0 0.0
    %333 = vmatprep.subr.mxu0 0.0
    %334 = vmatpush1.xpose.msra.mxu0 0.0
    %335 = vmatprep.subr.mxu0 0.0
    %336 = vmatpush1.xpose.msra.mxu0 0.0
    %337 = vmatprep.subr.mxu0 0.0
    %338 = vmatpush1.xpose.msra.mxu0 0.0
    %339 = vmatprep.subr.mxu0 0.0
    %340 = vmatpush1.xpose.msra.mxu0 0.0
    %341 = vmatprep.subr.mxu0 0.0
    %342 = vmatpush1.xpose.msra.mxu0 0.0
    %343 = vmatprep.subr.mxu0 0.0
    %344 = vmatpush1.xpose.msra.mxu0 0.0
    %345 = vmatprep.subr.mxu0 0.0
    %346 = vmatpush1.xpose.msra.mxu0 0.0
    %347 = vmatprep.subr.mxu0 0.0
    %348 = vmatpush1.xpose.msra.mxu0 0.0
    %349 = vmatprep.subr.mxu0 0.0
    %350 = vmatpush1.xpose.msra.mxu0 0.0
    %351 = vmatprep.subr.mxu0 0.0
    %352 = vmatpush1.xpose.msra.mxu0 0.0
    %353 = vmatprep.subr.mxu0 0.0
    %354 = vmatpush1.xpose.msra.mxu0 0.0
    %355 = vmatprep.subr.mxu0 0.0
    %356 = vmatpush1.xpose.msra.mxu0 0.0
    %357 = vmatprep.subr.mxu0 0.0
    %358 = vmatpush1.xpose.msra.mxu0 0.0
    %359 = vmatprep.subr.mxu0 0.0
    %360 = vmatpush1.xpose.msra.mxu0 0.0
    %361 = vmatprep.subr.mxu0 0.0
    %362 = vmatpush1.xpose.msra.mxu0 0.0
    %363 = vmatprep.subr.mxu0 0.0
    %364 = vmatpush1.xpose.msra.mxu0 0.0
    %365 = vmatprep.subr.mxu0 0.0
    %366 = vmatpush1.xpose.msra.mxu0 0.0
    %367 = vmatprep.subr.mxu0 0.0
    %368 = vmatpush1.xpose.msra.mxu0 0.0
    %369 = vmatprep.subr.mxu0 0.0
    %370 = vmatpush1.xpose.msra.mxu0 0.0
    %371 = vmatprep.mubr.f32.mxu0 0.0
    %372 = vmatmul.mubr.f32.gmra.mrb[0].mxu0 %v305
    %v373 = vpop.f32.mrb[0].mxu0
    %v374 = vadd.f32 0.0, %v373
    %v375 = vpop.f32.mrb[0].mxu0
    %376 = vdwg.mxu0
    %v377 = vmul.f32 %v301, 0.17677669
    %v378 = vmul.f32 %v374, 0.17677669
    %vm379 = vcmask 64512
    %v380 = vsel %vm379, %v377, -inf
    %381 = vmax.xlane.f32.xlu0 %v380
    %v382 = vpop.xlane.xlu0 %381
    %v383 = vsel %vm379, %v378, -inf
    %384 = vmax.xlane.f32.xlu0 %v383
    %v385 = vpop.xlane.xlu0 %384
    %v386 = vsub.f32 %v377, %v382
    %v387 = vsub.f32 %v378, %v385
    %v388 = vmul.f32 %v386, 1.442695
    %v389 = vpow.pop %v388
    %v390 = vmul.f32 %v387, 1.442695
    %v391 = vpow.pop %v390
    %v392 = vsel %vm379, %v389, 0.0
    %393 = vadd.xlane.f32.xlu0 %v392
    %v394 = vpop.xlane.xlu0 %393
    %v395 = vsel %vm379, %v391, 0.0
    %396 = vadd.xlane.f32.xlu0 %v395
    %v397 = vpop.xlane.xlu0 %396
    %v398 = vrcp.pop %v394
    %v399 = vrcp.pop %v397
    %v400 = vmul.f32 %v389, %v398
    %v401 = vmul.f32 %v391, %v399
    %v403 = vsel %vm379, %v400, 0
    %405 = vmatprep.subr.mxu0 0.0
    %406 = vmatpush1.msra.mxu0 %v225
    %407 = vmatprep.subr.mxu0 0.0
    %408 = vmatpush1.msra.mxu0 0.0
    %409 = vmatprep.subr.mxu0 0.0
    %410 = vmatpush1.msra.mxu0 0.0
    %411 = vmatprep.subr.mxu0 0.0
    %412 = vmatpush1.msra.mxu0 0.0
    %413 = vmatprep.subr.mxu0 0.0
    %414 = vmatpush1.msra.mxu0 0.0
    %415 = vmatprep.subr.mxu0 0.0
    %416 = vmatpush1.msra.mxu0 0.0
    %417 = vmatprep.subr.mxu0 0.0
    %418 = vmatpush1.msra.mxu0 0.0
    %419 = vmatprep.subr.mxu0 0.0
    %420 = vmatpush1.msra.mxu0 0.0
    %421 = vmatprep.subr.mxu0 0.0
    %422 = vmatpush1.msra.mxu0 0.0
    %423 = vmatprep.subr.mxu0 0.0
    %424 = vmatpush1.msra.mxu0 0.0
    %425 = vmatprep.subr.mxu0 0.0
    %426 = vmatpush1.msra.mxu0 0.0
    %427 = vmatprep.subr.mxu0 0.0
    %428 = vmatpush1.msra.mxu0 0.0
    %429 = vmatprep.subr.mxu0 0.0
    %430 = vmatpush1.msra.mxu0 0.0
    %431 = vmatprep.subr.mxu0 0.0
    %432 = vmatpush1.msra.mxu0 0.0
    %433 = vmatprep.subr.mxu0 0.0
    %434 = vmatpush1.msra.mxu0 0.0
    %435 = vmatprep.subr.mxu0 0.0
    %436 = vmatpush1.msra.mxu0 0.0
    %437 = vmatprep.subr.mxu0 0.0
    %438 = vmatpush1.msra.mxu0 0.0
    %439 = vmatprep.subr.mxu0 0.0
    %440 = vmatpush1.msra.mxu0 0.0
    %441 = vmatprep.subr.mxu0 0.0
    %442 = vmatpush1.msra.mxu0 0.0
    %443 = vmatprep.subr.mxu0 0.0
    %444 = vmatpush1.msra.mxu0 0.0
    %445 = vmatprep.subr.mxu0 0.0
    %446 = vmatpush1.msra.mxu0 0.0
    %447 = vmatprep.subr.mxu0 0.0
    %448 = vmatpush1.msra.mxu0 0.0
    %449 = vmatprep.subr.mxu0 0.0
    %450 = vmatpush1.msra.mxu0 0.0
    %451 = vmatprep.subr.mxu0 0.0
    %452 = vmatpush1.msra.mxu0 0.0
    %453 = vmatprep.subr.mxu0 0.0
    %454 = vmatpush1.msra.mxu0 0.0
    %455 = vmatprep.subr.mxu0 0.0
    %456 = vmatpush1.msra.mxu0 0.0
    %457 = vmatprep.subr.mxu0 0.0
    %458 = vmatpush1.msra.mxu0 0.0
    %459 = vmatprep.subr.mxu0 0.0
    %460 = vmatpush1.msra.mxu0 0.0
    %461 = vmatprep.subr.mxu0 0.0
    %462 = vmatpush1.msra.mxu0 0.0
    %463 = vmatprep.subr.mxu0 0.0
    %464 = vmatpush1.msra.mxu0 0.0
    %465 = vmatprep.subr.mxu0 0.0
    %466 = vmatpush1.msra.mxu0 0.0
    %467 = vmatprep.subr.mxu0 0.0
    %468 = vmatpush1.msra.mxu0 0.0
    %469 = vmatprep.mubr.f32.mxu0 0.0
    %470 = vmatmul.mubr.f32.gmra.mrb[0].mxu0 %v403
    %v471 = vpop.f32.mrb[0].mxu0
    %v472 = vadd.f32 0.0, %v471
    %v473 = vpop.f32.mrb[0].mxu0
    %474 = vdwg.mxu0
    %v476 = vsel %vm379, %v401, 0
    %478 = vmatprep.subr.mxu0 0.0
    %479 = vmatpush1.msra.mxu0 %v228
    %480 = vmatprep.subr.mxu0 0.0
    %481 = vmatpush1.msra.mxu0 0.0
    %482 = vmatprep.subr.mxu0 0.0
    %483 = vmatpush1.msra.mxu0 0.0
    %484 = vmatprep.subr.mxu0 0.0
    %485 = vmatpush1.msra.mxu0 0.0
    %486 = vmatprep.subr.mxu0 0.0
    %487 = vmatpush1.msra.mxu0 0.0
    %488 = vmatprep.subr.mxu0 0.0
    %489 = vmatpush1.msra.mxu0 0.0
    %490 = vmatprep.subr.mxu0 0.0
    %491 = vmatpush1.msra.mxu0 0.0
    %492 = vmatprep.subr.mxu0 0.0
    %493 = vmatpush1.msra.mxu0 0.0
    %494 = vmatprep.subr.mxu0 0.0
    %495 = vmatpush1.msra.mxu0 0.0
    %496 = vmatprep.subr.mxu0 0.0
    %497 = vmatpush1.msra.mxu0 0.0
    %498 = vmatprep.subr.mxu0 0.0
    %499 = vmatpush1.msra.mxu0 0.0
    %500 = vmatprep.subr.mxu0 0.0
    %501 = vmatpush1.msra.mxu0 0.0
    %502 = vmatprep.subr.mxu0 0.0
    %503 = vmatpush1.msra.mxu0 0.0
    %504 = vmatprep.subr.mxu0 0.0
    %505 = vmatpush1.msra.mxu0 0.0
    %506 = vmatprep.subr.mxu0 0.0
    %507 = vmatpush1.msra.mxu0 0.0
    %508 = vmatprep.subr.mxu0 0.0
    %509 = vmatpush1.msra.mxu0 0.0
    %510 = vmatprep.subr.mxu0 0.0
    %511 = vmatpush1.msra.mxu0 0.0
    %512 = vmatprep.subr.mxu0 0.0
    %513 = vmatpush1.msra.mxu0 0.0
    %514 = vmatprep.subr.mxu0 0.0
    %515 = vmatpush1.msra.mxu0 0.0
    %516 = vmatprep.subr.mxu0 0.0
    %517 = vmatpush1.msra.mxu0 0.0
    %518 = vmatprep.subr.mxu0 0.0
    %519 = vmatpush1.msra.mxu0 0.0
    %520 = vmatprep.subr.mxu0 0.0
    %521 = vmatpush1.msra.mxu0 0.0
    %522 = vmatprep.subr.mxu0 0.0
    %523 = vmatpush1.msra.mxu0 0.0
    %524 = vmatprep.subr.mxu0 0.0
    %525 = vmatpush1.msra.mxu0 0.0
    %526 = vmatprep.subr.mxu0 0.0
    %527 = vmatpush1.msra.mxu0 0.0
    %528 = vmatprep.subr.mxu0 0.0
    %529 = vmatpush1.msra.mxu0 0.0
    %530 = vmatprep.subr.mxu0 0.0
    %531 = vmatpush1.msra.mxu0 0.0
    %532 = vmatprep.subr.mxu0 0.0
    %533 = vmatpush1.msra.mxu0 0.0
    %534 = vmatprep.subr.mxu0 0.0
    %535 = vmatpush1.msra.mxu0 0.0
    %536 = vmatprep.subr.mxu0 0.0
    %537 = vmatpush1.msra.mxu0 0.0
    %538 = vmatprep.subr.mxu0 0.0
    %539 = vmatpush1.msra.mxu0 0.0
    %540 = vmatprep.subr.mxu0 0.0
    %541 = vmatpush1.msra.mxu0 0.0
    %542 = vmatprep.mubr.f32.mxu0 0.0
    %543 = vmatmul.mubr.f32.gmra.mrb[0].mxu0 %v476
    %v544 = vpop.f32.mrb[0].mxu0
    %v545 = vadd.f32 0.0, %v544
    %v546 = vpop.f32.mrb[0].mxu0
    %547 = vdwg.mxu0
    %v548 = vpack.c.bf16 %v545, %v472
    %v550 = vlaneseq
    %v551 = vshrl.u32 %v550, 7
    %v552 = vsub.s32 0, %v551
    %v553 = vrot.slane %v57, %v552
    %v554 = vlaneseq
    %v555 = vshrl.u32 %v554, 7
    %v556 = vsub.s32 1, %v555
    %v557 = vrot.slane %v57, %v556
    %v564 = vunpack.c.l.b16 %v39
    %v565 = vunpack.c.h.b16 %v39
    %v566 = vunpack.c.l.b16 %v40
    %v567 = vunpack.c.h.b16 %v40
    %v568 = vunpack.c.l.b16 %v41
    %v569 = vunpack.c.h.b16 %v41
    %v570 = vunpack.c.l.b16 %v42
    %v571 = vunpack.c.h.b16 %v42
    %v572 = vpack.c.b16 %v566, %v564
    %v573 = vpack.c.b16 %v567, %v565
    %v574 = vpack.c.b16 %v570, %v568
    %v575 = vpack.c.b16 %v571, %v569
    %v581 = vsel %vm186, %v548, 0
    %583 = vmatprep.subr.bf16.mxu0 %v573
    %584 = vmatpush1.bf16.msra.mxu0 %v572
    %585 = vmatprep.subr.bf16.mxu0 %v575
    %586 = vmatpush1.bf16.msra.mxu0 %v574
    %587 = vmatprep.subr.bf16.mxu0 0
    %588 = vmatpush1.bf16.msra.mxu0 0
    %589 = vmatprep.subr.bf16.mxu0 0
    %590 = vmatpush1.bf16.msra.mxu0 0
    %591 = vmatprep.subr.bf16.mxu0 0
    %592 = vmatpush1.bf16.msra.mxu0 0
    %593 = vmatprep.subr.bf16.mxu0 0
    %594 = vmatpush1.bf16.msra.mxu0 0
    %595 = vmatprep.subr.bf16.mxu0 0
    %596 = vmatpush1.bf16.msra.mxu0 0
    %597 = vmatprep.subr.bf16.mxu0 0
    %598 = vmatpush1.bf16.msra.mxu0 0
    %599 = vmatprep.subr.bf16.mxu0 0
    %600 = vmatpush1.bf16.msra.mxu0 0
    %601 = vmatprep.subr.bf16.mxu0 0
    %602 = vmatpush1.bf16.msra.mxu0 0
    %603 = vmatprep.subr.bf16.mxu0 0
    %604 = vmatpush1.bf16.msra.mxu0 0
    %605 = vmatprep.subr.bf16.mxu0 0
    %606 = vmatpush1.bf16.msra.mxu0 0
    %607 = vmatprep.subr.bf16.mxu0 0
    %608 = vmatpush1.bf16.msra.mxu0 0
    %609 = vmatprep.subr.bf16.mxu0 0
    %610 = vmatpush1.bf16.msra.mxu0 0
    %611 = vmatprep.subr.bf16.mxu0 0
    %612 = vmatpush1.bf16.msra.mxu0 0
    %613 = vmatprep.subr.bf16.mxu0 0
    %614 = vmatpush1.bf16.msra.mxu0 0
    %615 = vmatprep.mubr.bf16.mxu0 0
    %616 = vmatmul.mubr.bf16.gmra.mrb[0].mxu0 %v581
    %v617 = vpop.f32.mrb[0].mxu0
    %v618 = vadd.f32 %v553, %v617
    %v619 = vpop.f32.mrb[0].mxu0
    %v620 = vadd.f32 %v557, %v619
    %v621 = vpop.f32.mrb[0].mxu0
    %v622 = vadd.f32 %v553, %v621
    %v623 = vpop.f32.mrb[0].mxu0
    %v624 = vadd.f32 %v557, %v623
    %625 = vdwg.mxu0
    %v626 = vpack.c.bf16 0.0, 0.0
    %v635 = vunpack.c.l.b16 %v43
    %v636 = vunpack.c.h.b16 %v43
    %v637 = vunpack.c.l.b16 %v44
    %v638 = vunpack.c.h.b16 %v44
    %v639 = vunpack.c.l.b16 %v45
    %v640 = vunpack.c.h.b16 %v45
    %v641 = vunpack.c.l.b16 %v46
    %v642 = vunpack.c.h.b16 %v46
    %v643 = vunpack.c.l.b16 %v47
    %v644 = vunpack.c.h.b16 %v47
    %v645 = vunpack.c.l.b16 %v48
    %v646 = vunpack.c.h.b16 %v48
    %v647 = vunpack.c.l.b16 %v49
    %v648 = vunpack.c.h.b16 %v49
    %v649 = vunpack.c.l.b16 %v50
    %v650 = vunpack.c.h.b16 %v50
    %v651 = vpack.c.b16 %v637, %v635
    %v652 = vpack.c.b16 %v638, %v636
    %v653 = vpack.c.b16 %v641, %v639
    %v654 = vpack.c.b16 %v642, %v640
    %v655 = vpack.c.b16 %v645, %v643
    %v656 = vpack.c.b16 %v646, %v644
    %v657 = vpack.c.b16 %v649, %v647
    %v658 = vpack.c.b16 %v650, %v648
    %v671 = vrot.slane %v622, 7
    %vm672 = vcmask 1041409
    %v673 = vsel %vm672, %v671, %v618
    %vm675 = vcmask 523264
    %v677 = vsel %vm675, %v626, 0
    %679 = vmatprep.subr.bf16.mxu0 %v652
    %680 = vmatpush1.bf16.msra.mxu0 %v651
    %681 = vmatprep.subr.bf16.mxu0 %v654
    %682 = vmatpush1.bf16.msra.mxu0 %v653
    %683 = vmatprep.subr.bf16.mxu0 %v656
    %684 = vmatpush1.bf16.msra.mxu0 %v655
    %685 = vmatprep.subr.bf16.mxu0 %v658
    %686 = vmatpush1.bf16.msra.mxu0 %v657
    %687 = vmatprep.subr.bf16.mxu0 0
    %688 = vmatpush1.bf16.msra.mxu0 0
    %689 = vmatprep.subr.bf16.mxu0 0
    %690 = vmatpush1.bf16.msra.mxu0 0
    %691 = vmatprep.subr.bf16.mxu0 0
    %692 = vmatpush1.bf16.msra.mxu0 0
    %693 = vmatprep.subr.bf16.mxu0 0
    %694 = vmatpush1.bf16.msra.mxu0 0
    %695 = vmatprep.subr.bf16.mxu0 0
    %696 = vmatpush1.bf16.msra.mxu0 0
    %697 = vmatprep.subr.bf16.mxu0 0
    %698 = vmatpush1.bf16.msra.mxu0 0
    %699 = vmatprep.subr.bf16.mxu0 0
    %700 = vmatpush1.bf16.msra.mxu0 0
    %701 = vmatprep.subr.bf16.mxu0 0
    %702 = vmatpush1.bf16.msra.mxu0 0
    %703 = vmatprep.subr.bf16.mxu0 0
    %704 = vmatpush1.bf16.msra.mxu0 0
    %705 = vmatprep.subr.bf16.mxu0 0
    %706 = vmatpush1.bf16.msra.mxu0 0
    %707 = vmatprep.subr.bf16.mxu0 0
    %708 = vmatpush1.bf16.msra.mxu0 0
    %709 = vmatprep.subr.bf16.mxu0 0
    %710 = vmatpush1.bf16.msra.mxu0 0
    %711 = vmatprep.mubr.bf16.mxu0 0
    %712 = vmatmul.mubr.bf16.gmra.mrb[0].mxu0 %v677
    %v713 = vpop.f32.mrb[0].mxu0
    %v714 = vadd.f32 %v673, %v713
    %v715 = vpop.f32.mrb[0].mxu0
    %v716 = vpop.f32.mrb[0].mxu0
    %v717 = vpop.f32.mrb[0].mxu0
    %718 = vdwg.mxu0
    %v719 = vxor.u32 %v714, 2147483648
    %v720 = vmul.f32 %v719, 1.442695
    %v721 = vpow.pop %v720
    %v722 = vadd.f32 %v721, 1.0
    %v723 = vrcp.pop %v722
    %v724 = vmul.f32 1.0, %v723
    %v725 = vtanh.pop %v714
    %v726 = vmul.f32 %v724, 0.0
    %728 = vrot.lane.b32.xlu0 %v725, 32
    %v729 = vpop.permute.xlu0 %728
    %v731 = vmul.f32 %v724, %v729
    %733 = vrot.lane.b32.xlu0 %v731, 32
    %v734 = vpop.permute.xlu0 %733
    %v736 = vadd.f32 %v726, %v734
    %v737 = vtanh.pop %v736
    %739 = vrot.lane.b32.xlu0 %v737, 32
    %v740 = vpop.permute.xlu0 %739
    %v742 = vmul.f32 %v724, %v740
    %744 = vrot.lane.b32.xlu0 %v742, 64
    %v745 = vpop.permute.xlu0 %744
    %v747 = vsel %vm186, %v745, 0.0
    %v748 = vpack.c.bf16 %v747, %v747
    %v749 = vrot.slane %v618, 1
    %v750 = vsel %vm672, %v622, %v749
    %v751 = vrot.slane %v620, 1
    %v752 = vsel %vm672, %v624, %v751
    %v756 = vsel %vm675, %v748, 0
    %758 = vmatprep.subr.bf16.mxu0 %v652
    %759 = vmatpush1.bf16.msra.mxu0 %v651
    %760 = vmatprep.subr.bf16.mxu0 %v654
    %761 = vmatpush1.bf16.msra.mxu0 %v653
    %762 = vmatprep.subr.bf16.mxu0 %v656
    %763 = vmatpush1.bf16.msra.mxu0 %v655
    %764 = vmatprep.subr.bf16.mxu0 %v658
    %765 = vmatpush1.bf16.msra.mxu0 %v657
    %766 = vmatprep.subr.bf16.mxu0 0
    %767 = vmatpush1.bf16.msra.mxu0 0
    %768 = vmatprep.subr.bf16.mxu0 0
    %769 = vmatpush1.bf16.msra.mxu0 0
    %770 = vmatprep.subr.bf16.mxu0 0
    %771 = vmatpush1.bf16.msra.mxu0 0
    %772 = vmatprep.subr.bf16.mxu0 0
    %773 = vmatpush1.bf16.msra.mxu0 0
    %774 = vmatprep.subr.bf16.mxu0 0
    %775 = vmatpush1.bf16.msra.mxu0 0
    %776 = vmatprep.subr.bf16.mxu0 0
    %777 = vmatpush1.bf16.msra.mxu0 0
    %778 = vmatprep.subr.bf16.mxu0 0
    %779 = vmatpush1.bf16.msra.mxu0 0
    %780 = vmatprep.subr.bf16.mxu0 0
    %781 = vmatpush1.bf16.msra.mxu0 0
    %782 = vmatprep.subr.bf16.mxu0 0
    %783 = vmatpush1.bf16.msra.mxu0 0
    %784 = vmatprep.subr.bf16.mxu0 0
    %785 = vmatpush1.bf16.msra.mxu0 0
    %786 = vmatprep.subr.bf16.mxu0 0
    %787 = vmatpush1.bf16.msra.mxu0 0
    %788 = vmatprep.subr.bf16.mxu0 0
    %789 = vmatpush1.bf16.msra.mxu0 0
    %790 = vmatprep.mubr.bf16.mxu0 0
    %791 = vmatmul.mubr.bf16.gmra.mrb[0].mxu0 %v756
    %v792 = vpop.f32.mrb[0].mxu0
    %v793 = vadd.f32 %v750, %v792
    %v794 = vpop.f32.mrb[0].mxu0
    %v795 = vadd.f32 %v752, %v794
    %v796 = vpop.f32.mrb[0].mxu0
    %v797 = vpop.f32.mrb[0].mxu0
    %798 = vdwg.mxu0
    %v799 = vxor.u32 %v793, 2147483648
    %v800 = vxor.u32 %v795, 2147483648
    %v801 = vmul.f32 %v799, 1.442695
    %v802 = vpow.pop %v801
    %v803 = vmul.f32 %v800, 1.442695
    %v804 = vpow.pop %v803
    %v805 = vadd.f32 %v802, 1.0
    %v806 = vadd.f32 %v804, 1.0
    %v807 = vrcp.pop %v805
    %v808 = vmul.f32 1.0, %v807
    %v809 = vrcp.pop %v806
    %v810 = vmul.f32 1.0, %v809
    %v811 = vtanh.pop %v793
    %v812 = vtanh.pop %v795
    %v813 = vmul.f32 %v810, 0.0
    %815 = vrot.lane.b32.xlu0 %v812, 32
    %v816 = vpop.permute.xlu0 %815
    %v818 = vmul.f32 %v810, %v816
    %820 = vrot.lane.b32.xlu0 %v818, 32
    %v821 = vpop.permute.xlu0 %820
    %v823 = vadd.f32 %v813, %v821
    %v824 = vtanh.pop %v823
    %826 = vrot.lane.b32.xlu0 %v824, 32
    %v827 = vpop.permute.xlu0 %826
    %v829 = vmul.f32 %v810, %v827
    %v832 = vunpack.c.l.s4 1966171168
    %v833 = vunpack.c.0.s8 %v832
    %v834 = vlaneseq
    %v835 = vshrl.u32 %v834, 7
    %v836 = vsub.s32 %v833, %v835
    %v837 = vrot.slane %v829, %v836
    %v838 = vcombine.high %v837, %v837
    %v840 = vunpack.c.l.s4 1966171168
    %v841 = vunpack.c.0.s8 %v840
    %v842 = vlaneseq
    %v843 = vshrl.u32 %v842, 7
    %v844 = vsub.s32 %v841, %v843
    %v845 = vrot.slane %v837, %v844
    %v847 = vunpack.c.l.s4 1966171168
    %v848 = vunpack.c.0.s8 %v847
    %v849 = vlaneseq
    %v850 = vshrl.u32 %v849, 7
    %v851 = vsub.s32 %v848, %v850
    %v852 = vrot.slane %v838, %v851
    %v853 = vlaneseq
    %v854 = vshrl.u32 %v853, 7
    %v855 = vsub.s32 0, %v854
    %v856 = vrot.slane %v845, %v855
    %v857 = vlaneseq
    %v858 = vshrl.u32 %v857, 7
    %v859 = vsub.s32 0, %v858
    %v860 = vrot.slane %v852, %v859
    %861 = vrot.lane.b32.xlu0 %v856, 64
    %v862 = vpop.permute.xlu0 %861
    %863 = vrot.lane.b32.xlu0 %v860, 64
    %v864 = vpop.permute.xlu0 %863
    %vm867 = vcmask 253952
    %868 = vst.msk [vmem:[#allocation2] sm:$0x1] %vm867, %v862
    %869 = vst.msk [vmem:[#allocation2 + $0x8] sm:$0x1] %vm867, %v864
    %v870 = vmul.f32 %v808, %v736
    %872 = vrot.lane.b32.xlu0 %v811, 32
    %v873 = vpop.permute.xlu0 %872
    %v875 = vmul.f32 %v808, %v873
    %877 = vrot.lane.b32.xlu0 %v875, 32
    %v878 = vpop.permute.xlu0 %877
    %v880 = vadd.f32 %v870, %v878
    %v881 = vtanh.pop %v880
    %883 = vrot.lane.b32.xlu0 %v881, 32
    %v884 = vpop.permute.xlu0 %883
    %v886 = vmul.f32 %v808, %v884
    %888 = vrot.lane.b32.xlu0 %v886, 64
    %v889 = vpop.permute.xlu0 %888
    %891 = vrot.lane.b32.xlu0 %v829, 96
    %v892 = vpop.permute.xlu0 %891
    %v894 = vsel %vm186, %v889, %v892
    %v895 = vpack.c.bf16 %v894, %v894
    %v896 = vrot.slane %v618, 2
    %v897 = vrot.slane %v622, 1
    %v898 = vsel %vm672, %v897, %v896
    %v899 = vrot.slane %v620, 2
    %v900 = vrot.slane %v624, 1
    %v901 = vsel %vm672, %v900, %v899
    %v905 = vsel %vm675, %v895, 0
    %907 = vmatprep.subr.bf16.mxu0 %v652
    %908 = vmatpush1.bf16.msra.mxu0 %v651
    %909 = vmatprep.subr.bf16.mxu0 %v654
    %910 = vmatpush1.bf16.msra.mxu0 %v653
    %911 = vmatprep.subr.bf16.mxu0 %v656
    %912 = vmatpush1.bf16.msra.mxu0 %v655
    %913 = vmatprep.subr.bf16.mxu0 %v658
    %914 = vmatpush1.bf16.msra.mxu0 %v657
    %915 = vmatprep.subr.bf16.mxu0 0
    %916 = vmatpush1.bf16.msra.mxu0 0
    %917 = vmatprep.subr.bf16.mxu0 0
    %918 = vmatpush1.bf16.msra.mxu0 0
    %919 = vmatprep.subr.bf16.mxu0 0
    %920 = vmatpush1.bf16.msra.mxu0 0
    %921 = vmatprep.subr.bf16.mxu0 0
    %922 = vmatpush1.bf16.msra.mxu0 0
    %923 = vmatprep.subr.bf16.mxu0 0
    %924 = vmatpush1.bf16.msra.mxu0 0
    %925 = vmatprep.subr.bf16.mxu0 0
    %926 = vmatpush1.bf16.msra.mxu0 0
    %927 = vmatprep.subr.bf16.mxu0 0
    %928 = vmatpush1.bf16.msra.mxu0 0
    %929 = vmatprep.subr.bf16.mxu0 0
    %930 = vmatpush1.bf16.msra.mxu0 0
    %931 = vmatprep.subr.bf16.mxu0 0
    %932 = vmatpush1.bf16.msra.mxu0 0
    %933 = vmatprep.subr.bf16.mxu0 0
    %934 = vmatpush1.bf16.msra.mxu0 0
    %935 = vmatprep.subr.bf16.mxu0 0
    %936 = vmatpush1.bf16.msra.mxu0 0
    %937 = vmatprep.subr.bf16.mxu0 0
    %938 = vmatpush1.bf16.msra.mxu0 0
    %939 = vmatprep.mubr.bf16.mxu0 0
    %940 = vmatmul.mubr.bf16.gmra.mrb[0].mxu0 %v905
    %v941 = vpop.f32.mrb[0].mxu0
    %v942 = vadd.f32 %v898, %v941
    %v943 = vpop.f32.mrb[0].mxu0
    %v944 = vadd.f32 %v901, %v943
    %v945 = vpop.f32.mrb[0].mxu0
    %v946 = vpop.f32.mrb[0].mxu0
    %947 = vdwg.mxu0
    %v948 = vxor.u32 %v942, 2147483648
    %v949 = vxor.u32 %v944, 2147483648
    %v950 = vmul.f32 %v948, 1.442695
    %v951 = vpow.pop %v950
    %v952 = vmul.f32 %v949, 1.442695
    %v953 = vpow.pop %v952
    %v954 = vadd.f32 %v951, 1.0
    %v955 = vadd.f32 %v953, 1.0
    %v956 = vrcp.pop %v954
    %v957 = vmul.f32 1.0, %v956
    %v958 = vrcp.pop %v955
    %v959 = vmul.f32 1.0, %v958
    %v960 = vtanh.pop %v942
    %v961 = vtanh.pop %v944
    %v962 = vmul.f32 %v959, %v823
    %964 = vrot.lane.b32.xlu0 %v961, 32
    %v965 = vpop.permute.xlu0 %964
    %v967 = vmul.f32 %v959, %v965
    %969 = vrot.lane.b32.xlu0 %v967, 32
    %v970 = vpop.permute.xlu0 %969
    %v972 = vadd.f32 %v962, %v970
    %v973 = vtanh.pop %v972
    %975 = vrot.lane.b32.xlu0 %v973, 32
    %v976 = vpop.permute.xlu0 %975
    %v978 = vmul.f32 %v959, %v976
    %v981 = vunpack.c.l.s4 1966171168
    %v982 = vunpack.c.0.s8 %v981
    %v983 = vlaneseq
    %v984 = vshrl.u32 %v983, 7
    %v985 = vsub.s32 %v982, %v984
    %v986 = vrot.slane %v978, %v985
    %v987 = vcombine.high %v986, %v986
    %v989 = vunpack.c.l.s4 1966171168
    %v990 = vunpack.c.0.s8 %v989
    %v991 = vlaneseq
    %v992 = vshrl.u32 %v991, 7
    %v993 = vsub.s32 %v990, %v992
    %v994 = vrot.slane %v986, %v993
    %v996 = vunpack.c.l.s4 1966171168
    %v997 = vunpack.c.0.s8 %v996
    %v998 = vlaneseq
    %v999 = vshrl.u32 %v998, 7
    %v1000 = vsub.s32 %v997, %v999
    %v1001 = vrot.slane %v987, %v1000
    %v1002 = vlaneseq
    %v1003 = vshrl.u32 %v1002, 7
    %v1004 = vsub.s32 0, %v1003
    %v1005 = vrot.slane %v994, %v1004
    %v1006 = vlaneseq
    %v1007 = vshrl.u32 %v1006, 7
    %v1008 = vsub.s32 0, %v1007
    %v1009 = vrot.slane %v1001, %v1008
    %1010 = vrot.lane.b32.xlu0 %v1005, 64
    %v1011 = vpop.permute.xlu0 %1010
    %1012 = vrot.lane.b32.xlu0 %v1009, 64
    %v1013 = vpop.permute.xlu0 %1012
    %1016 = vst.msk [vmem:[#allocation2 + $0x1] sm:$0x1] %vm867, %v1011
    %1017 = vst.msk [vmem:[#allocation2 + $0x9] sm:$0x1] %vm867, %v1013
    %v1018 = vmul.f32 %v957, %v880
    %1020 = vrot.lane.b32.xlu0 %v960, 32
    %v1021 = vpop.permute.xlu0 %1020
    %v1023 = vmul.f32 %v957, %v1021
    %1025 = vrot.lane.b32.xlu0 %v1023, 32
    %v1026 = vpop.permute.xlu0 %1025
    %v1028 = vadd.f32 %v1018, %v1026
    %v1029 = vtanh.pop %v1028
    %1031 = vrot.lane.b32.xlu0 %v1029, 32
    %v1032 = vpop.permute.xlu0 %1031
    %v1034 = vmul.f32 %v957, %v1032
    %1036 = vrot.lane.b32.xlu0 %v1034, 64
    %v1037 = vpop.permute.xlu0 %1036
    %1039 = vrot.lane.b32.xlu0 %v978, 96
    %v1040 = vpop.permute.xlu0 %1039
    %v1042 = vsel %vm186, %v1037, %v1040
    %v1043 = vpack.c.bf16 %v1042, %v1042
    %v1044 = vrot.slane %v618, 3
    %v1045 = vrot.slane %v622, 2
    %v1046 = vsel %vm672, %v1045, %v1044
    %v1047 = vrot.slane %v620, 3
    %v1048 = vrot.slane %v624, 2
    %v1049 = vsel %vm672, %v1048, %v1047
    %v1053 = vsel %vm675, %v1043, 0
    %1055 = vmatprep.subr.bf16.mxu0 %v652
    %1056 = vmatpush1.bf16.msra.mxu0 %v651
    %1057 = vmatprep.subr.bf16.mxu0 %v654
    %1058 = vmatpush1.bf16.msra.mxu0 %v653
    %1059 = vmatprep.subr.bf16.mxu0 %v656
    %1060 = vmatpush1.bf16.msra.mxu0 %v655
    %1061 = vmatprep.subr.bf16.mxu0 %v658
    %1062 = vmatpush1.bf16.msra.mxu0 %v657
    %1063 = vmatprep.subr.bf16.mxu0 0
    %1064 = vmatpush1.bf16.msra.mxu0 0
    %1065 = vmatprep.subr.bf16.mxu0 0
    %1066 = vmatpush1.bf16.msra.mxu0 0
    %1067 = vmatprep.subr.bf16.mxu0 0
    %1068 = vmatpush1.bf16.msra.mxu0 0
    %1069 = vmatprep.subr.bf16.mxu0 0
    %1070 = vmatpush1.bf16.msra.mxu0 0
    %1071 = vmatprep.subr.bf16.mxu0 0
    %1072 = vmatpush1.bf16.msra.mxu0 0
    %1073 = vmatprep.subr.bf16.mxu0 0
    %1074 = vmatpush1.bf16.msra.mxu0 0
    %1075 = vmatprep.subr.bf16.mxu0 0
    %1076 = vmatpush1.bf16.msra.mxu0 0
    %1077 = vmatprep.subr.bf16.mxu0 0
    %1078 = vmatpush1.bf16.msra.mxu0 0
    %1079 = vmatprep.subr.bf16.mxu0 0
    %1080 = vmatpush1.bf16.msra.mxu0 0
    %1081 = vmatprep.subr.bf16.mxu0 0
    %1082 = vmatpush1.bf16.msra.mxu0 0
    %1083 = vmatprep.subr.bf16.mxu0 0
    %1084 = vmatpush1.bf16.msra.mxu0 0
    %1085 = vmatprep.subr.bf16.mxu0 0
    %1086 = vmatpush1.bf16.msra.mxu0 0
    %1087 = vmatprep.mubr.bf16.mxu0 0
    %1088 = vmatmul.mubr.bf16.gmra.mrb[0].mxu0 %v1053
    %v1089 = vpop.f32.mrb[0].mxu0
    %v1090 = vadd.f32 %v1046, %v1089
    %v1091 = vpop.f32.mrb[0].mxu0
    %v1092 = vadd.f32 %v1049, %v1091
    %v1093 = vpop.f32.mrb[0].mxu0
    %v1094 = vpop.f32.mrb[0].mxu0
    %1095 = vdwg.mxu0
    %v1096 = vxor.u32 %v1090, 2147483648
    %v1097 = vxor.u32 %v1092, 2147483648
    %v1098 = vmul.f32 %v1096, 1.442695
    %v1099 = vpow.pop %v1098
    %v1100 = vmul.f32 %v1097, 1.442695
    %v1101 = vpow.pop %v1100
    %v1102 = vadd.f32 %v1099, 1.0
    %v1103 = vadd.f32 %v1101, 1.0
    %v1104 = vrcp.pop %v1102
    %v1105 = vmul.f32 1.0, %v1104
    %v1106 = vrcp.pop %v1103
    %v1107 = vmul.f32 1.0, %v1106
    %v1108 = vtanh.pop %v1090
    %v1109 = vtanh.pop %v1092
    %v1110 = vmul.f32 %v1107, %v972
    %1112 = vrot.lane.b32.xlu0 %v1109, 32
    %v1113 = vpop.permute.xlu0 %1112
    %v1115 = vmul.f32 %v1107, %v1113
    %1117 = vrot.lane.b32.xlu0 %v1115, 32
    %v1118 = vpop.permute.xlu0 %1117
    %v1120 = vadd.f32 %v1110, %v1118
    %v1121 = vtanh.pop %v1120
    %1123 = vrot.lane.b32.xlu0 %v1121, 32
    %v1124 = vpop.permute.xlu0 %1123
    %v1126 = vmul.f32 %v1107, %v1124
    %v1129 = vunpack.c.l.s4 1966171168
    %v1130 = vunpack.c.0.s8 %v1129
    %v1131 = vlaneseq
    %v1132 = vshrl.u32 %v1131, 7
    %v1133 = vsub.s32 %v1130, %v1132
    %v1134 = vrot.slane %v1126, %v1133
    %v1135 = vcombine.high %v1134, %v1134
    %v1137 = vunpack.c.l.s4 1966171168
    %v1138 = vunpack.c.0.s8 %v1137
    %v1139 = vlaneseq
    %v1140 = vshrl.u32 %v1139, 7
    %v1141 = vsub.s32 %v1138, %v1140
    %v1142 = vrot.slane %v1134, %v1141
    %v1144 = vunpack.c.l.s4 1966171168
    %v1145 = vunpack.c.0.s8 %v1144
    %v1146 = vlaneseq
    %v1147 = vshrl.u32 %v1146, 7
    %v1148 = vsub.s32 %v1145, %v1147
    %v1149 = vrot.slane %v1135, %v1148
    %v1150 = vlaneseq
    %v1151 = vshrl.u32 %v1150, 7
    %v1152 = vsub.s32 0, %v1151
    %v1153 = vrot.slane %v1142, %v1152
    %v1154 = vlaneseq
    %v1155 = vshrl.u32 %v1154, 7
    %v1156 = vsub.s32 0, %v1155
    %v1157 = vrot.slane %v1149, %v1156
    %1158 = vrot.lane.b32.xlu0 %v1153, 64
    %v1159 = vpop.permute.xlu0 %1158
    %1160 = vrot.lane.b32.xlu0 %v1157, 64
    %v1161 = vpop.permute.xlu0 %1160
    %1164 = vst.msk [vmem:[#allocation2 + $0x2] sm:$0x1] %vm867, %v1159
    %1165 = vst.msk [vmem:[#allocation2 + $0xa] sm:$0x1] %vm867, %v1161
    %v1166 = vmul.f32 %v1105, %v1028
    %1168 = vrot.lane.b32.xlu0 %v1108, 32
    %v1169 = vpop.permute.xlu0 %1168
    %v1171 = vmul.f32 %v1105, %v1169
    %1173 = vrot.lane.b32.xlu0 %v1171, 32
    %v1174 = vpop.permute.xlu0 %1173
    %v1176 = vadd.f32 %v1166, %v1174
    %v1177 = vtanh.pop %v1176
    %1179 = vrot.lane.b32.xlu0 %v1177, 32
    %v1180 = vpop.permute.xlu0 %1179
    %v1182 = vmul.f32 %v1105, %v1180
    %1184 = vrot.lane.b32.xlu0 %v1182, 64
    %v1185 = vpop.permute.xlu0 %1184
    %1187 = vrot.lane.b32.xlu0 %v1126, 96
    %v1188 = vpop.permute.xlu0 %1187
    %v1190 = vsel %vm186, %v1185, %v1188
    %v1191 = vpack.c.bf16 %v1190, %v1190
    %v1192 = vrot.slane %v618, 4
    %v1193 = vrot.slane %v622, 3
    %v1194 = vsel %vm672, %v1193, %v1192
    %v1195 = vrot.slane %v620, 4
    %v1196 = vrot.slane %v624, 3
    %v1197 = vsel %vm672, %v1196, %v1195
    %v1201 = vsel %vm675, %v1191, 0
    %1203 = vmatprep.subr.bf16.mxu0 %v652
    %1204 = vmatpush1.bf16.msra.mxu0 %v651
    %1205 = vmatprep.subr.bf16.mxu0 %v654
    %1206 = vmatpush1.bf16.msra.mxu0 %v653
    %1207 = vmatprep.subr.bf16.mxu0 %v656
    %1208 = vmatpush1.bf16.msra.mxu0 %v655
    %1209 = vmatprep.subr.bf16.mxu0 %v658
    %1210 = vmatpush1.bf16.msra.mxu0 %v657
    %1211 = vmatprep.subr.bf16.mxu0 0
    %1212 = vmatpush1.bf16.msra.mxu0 0
    %1213 = vmatprep.subr.bf16.mxu0 0
    %1214 = vmatpush1.bf16.msra.mxu0 0
    %1215 = vmatprep.subr.bf16.mxu0 0
    %1216 = vmatpush1.bf16.msra.mxu0 0
    %1217 = vmatprep.subr.bf16.mxu0 0
    %1218 = vmatpush1.bf16.msra.mxu0 0
    %1219 = vmatprep.subr.bf16.mxu0 0
    %1220 = vmatpush1.bf16.msra.mxu0 0
    %1221 = vmatprep.subr.bf16.mxu0 0
    %1222 = vmatpush1.bf16.msra.mxu0 0
    %1223 = vmatprep.subr.bf16.mxu0 0
    %1224 = vmatpush1.bf16.msra.mxu0 0
    %1225 = vmatprep.subr.bf16.mxu0 0
    %1226 = vmatpush1.bf16.msra.mxu0 0
    %1227 = vmatprep.subr.bf16.mxu0 0
    %1228 = vmatpush1.bf16.msra.mxu0 0
    %1229 = vmatprep.subr.bf16.mxu0 0
    %1230 = vmatpush1.bf16.msra.mxu0 0
    %1231 = vmatprep.subr.bf16.mxu0 0
    %1232 = vmatpush1.bf16.msra.mxu0 0
    %1233 = vmatprep.subr.bf16.mxu0 0
    %1234 = vmatpush1.bf16.msra.mxu0 0
    %1235 = vmatprep.mubr.bf16.mxu0 0
    %1236 = vmatmul.mubr.bf16.gmra.mrb[0].mxu0 %v1201
    %v1237 = vpop.f32.mrb[0].mxu0
    %v1238 = vadd.f32 %v1194, %v1237
    %v1239 = vpop.f32.mrb[0].mxu0
    %v1240 = vadd.f32 %v1197, %v1239
    %v1241 = vpop.f32.mrb[0].mxu0
    %v1242 = vpop.f32.mrb[0].mxu0
    %1243 = vdwg.mxu0
    %v1244 = vxor.u32 %v1238, 2147483648
    %v1245 = vxor.u32 %v1240, 2147483648
    %v1246 = vmul.f32 %v1244, 1.442695
    %v1247 = vpow.pop %v1246
    %v1248 = vmul.f32 %v1245, 1.442695
    %v1249 = vpow.pop %v1248
    %v1250 = vadd.f32 %v1247, 1.0
    %v1251 = vadd.f32 %v1249, 1.0
    %v1252 = vrcp.pop %v1250
    %v1253 = vmul.f32 1.0, %v1252
    %v1254 = vrcp.pop %v1251
    %v1255 = vmul.f32 1.0, %v1254
    %v1256 = vtanh.pop %v1238
    %v1257 = vtanh.pop %v1240
    %v1258 = vmul.f32 %v1255, %v1120
    %1260 = vrot.lane.b32.xlu0 %v1257, 32
    %v1261 = vpop.permute.xlu0 %1260
    %v1263 = vmul.f32 %v1255, %v1261
    %1265 = vrot.lane.b32.xlu0 %v1263, 32
    %v1266 = vpop.permute.xlu0 %1265
    %v1268 = vadd.f32 %v1258, %v1266
    %v1269 = vtanh.pop %v1268
    %1271 = vrot.lane.b32.xlu0 %v1269, 32
    %v1272 = vpop.permute.xlu0 %1271
    %v1274 = vmul.f32 %v1255, %v1272
    %v1277 = vunpack.c.l.s4 1966171168
    %v1278 = vunpack.c.0.s8 %v1277
    %v1279 = vlaneseq
    %v1280 = vshrl.u32 %v1279, 7
    %v1281 = vsub.s32 %v1278, %v1280
    %v1282 = vrot.slane %v1274, %v1281
    %v1283 = vcombine.high %v1282, %v1282
    %v1285 = vunpack.c.l.s4 1966171168
    %v1286 = vunpack.c.0.s8 %v1285
    %v1287 = vlaneseq
    %v1288 = vshrl.u32 %v1287, 7
    %v1289 = vsub.s32 %v1286, %v1288
    %v1290 = vrot.slane %v1282, %v1289
    %v1292 = vunpack.c.l.s4 1966171168
    %v1293 = vunpack.c.0.s8 %v1292
    %v1294 = vlaneseq
    %v1295 = vshrl.u32 %v1294, 7
    %v1296 = vsub.s32 %v1293, %v1295
    %v1297 = vrot.slane %v1283, %v1296
    %v1298 = vlaneseq
    %v1299 = vshrl.u32 %v1298, 7
    %v1300 = vsub.s32 0, %v1299
    %v1301 = vrot.slane %v1290, %v1300
    %v1302 = vlaneseq
    %v1303 = vshrl.u32 %v1302, 7
    %v1304 = vsub.s32 0, %v1303
    %v1305 = vrot.slane %v1297, %v1304
    %1306 = vrot.lane.b32.xlu0 %v1301, 64
    %v1307 = vpop.permute.xlu0 %1306
    %1308 = vrot.lane.b32.xlu0 %v1305, 64
    %v1309 = vpop.permute.xlu0 %1308
    %1312 = vst.msk [vmem:[#allocation2 + $0x3] sm:$0x1] %vm867, %v1307
    %1313 = vst.msk [vmem:[#allocation2 + $0xb] sm:$0x1] %vm867, %v1309
    %v1314 = vmul.f32 %v1253, %v1176
    %1316 = vrot.lane.b32.xlu0 %v1256, 32
    %v1317 = vpop.permute.xlu0 %1316
    %v1319 = vmul.f32 %v1253, %v1317
    %1321 = vrot.lane.b32.xlu0 %v1319, 32
    %v1322 = vpop.permute.xlu0 %1321
    %v1324 = vadd.f32 %v1314, %v1322
    %v1325 = vtanh.pop %v1324
    %1327 = vrot.lane.b32.xlu0 %v1325, 32
    %v1328 = vpop.permute.xlu0 %1327
    %v1330 = vmul.f32 %v1253, %v1328
    %1332 = vrot.lane.b32.xlu0 %v1330, 64
    %v1333 = vpop.permute.xlu0 %1332
    %1335 = vrot.lane.b32.xlu0 %v1274, 96
    %v1336 = vpop.permute.xlu0 %1335
    %v1338 = vsel %vm186, %v1333, %v1336
    %v1339 = vpack.c.bf16 %v1338, %v1338
    %v1340 = vrot.slane %v618, 5
    %v1341 = vrot.slane %v622, 4
    %v1342 = vsel %vm672, %v1341, %v1340
    %v1343 = vrot.slane %v620, 5
    %v1344 = vrot.slane %v624, 4
    %v1345 = vsel %vm672, %v1344, %v1343
    %v1349 = vsel %vm675, %v1339, 0
    %1351 = vmatprep.subr.bf16.mxu0 %v652
    %1352 = vmatpush1.bf16.msra.mxu0 %v651
    %1353 = vmatprep.subr.bf16.mxu0 %v654
    %1354 = vmatpush1.bf16.msra.mxu0 %v653
    %1355 = vmatprep.subr.bf16.mxu0 %v656
    %1356 = vmatpush1.bf16.msra.mxu0 %v655
    %1357 = vmatprep.subr.bf16.mxu0 %v658
    %1358 = vmatpush1.bf16.msra.mxu0 %v657
    %1359 = vmatprep.subr.bf16.mxu0 0
    %1360 = vmatpush1.bf16.msra.mxu0 0
    %1361 = vmatprep.subr.bf16.mxu0 0
    %1362 = vmatpush1.bf16.msra.mxu0 0
    %1363 = vmatprep.subr.bf16.mxu0 0
    %1364 = vmatpush1.bf16.msra.mxu0 0
    %1365 = vmatprep.subr.bf16.mxu0 0
    %1366 = vmatpush1.bf16.msra.mxu0 0
    %1367 = vmatprep.subr.bf16.mxu0 0
    %1368 = vmatpush1.bf16.msra.mxu0 0
    %1369 = vmatprep.subr.bf16.mxu0 0
    %1370 = vmatpush1.bf16.msra.mxu0 0
    %1371 = vmatprep.subr.bf16.mxu0 0
    %1372 = vmatpush1.bf16.msra.mxu0 0
    %1373 = vmatprep.subr.bf16.mxu0 0
    %1374 = vmatpush1.bf16.msra.mxu0 0
    %1375 = vmatprep.subr.bf16.mxu0 0
    %1376 = vmatpush1.bf16.msra.mxu0 0
    %1377 = vmatprep.subr.bf16.mxu0 0
    %1378 = vmatpush1.bf16.msra.mxu0 0
    %1379 = vmatprep.subr.bf16.mxu0 0
    %1380 = vmatpush1.bf16.msra.mxu0 0
    %1381 = vmatprep.subr.bf16.mxu0 0
    %1382 = vmatpush1.bf16.msra.mxu0 0
    %1383 = vmatprep.mubr.bf16.mxu0 0
    %1384 = vmatmul.mubr.bf16.gmra.mrb[0].mxu0 %v1349
    %v1385 = vpop.f32.mrb[0].mxu0
    %v1386 = vadd.f32 %v1342, %v1385
    %v1387 = vpop.f32.mrb[0].mxu0
    %v1388 = vadd.f32 %v1345, %v1387
    %v1389 = vpop.f32.mrb[0].mxu0
    %v1390 = vpop.f32.mrb[0].mxu0
    %1391 = vdwg.mxu0
    %v1392 = vxor.u32 %v1386, 2147483648
    %v1393 = vxor.u32 %v1388, 2147483648
    %v1394 = vmul.f32 %v1392, 1.442695
    %v1395 = vpow.pop %v1394
    %v1396 = vmul.f32 %v1393, 1.442695
    %v1397 = vpow.pop %v1396
    %v1398 = vadd.f32 %v1395, 1.0
    %v1399 = vadd.f32 %v1397, 1.0
    %v1400 = vrcp.pop %v1398
    %v1401 = vmul.f32 1.0, %v1400
    %v1402 = vrcp.pop %v1399
    %v1403 = vmul.f32 1.0, %v1402
    %v1404 = vtanh.pop %v1386
    %v1405 = vtanh.pop %v1388
    %v1406 = vmul.f32 %v1403, %v1268
    %1408 = vrot.lane.b32.xlu0 %v1405, 32
    %v1409 = vpop.permute.xlu0 %1408
    %v1411 = vmul.f32 %v1403, %v1409
    %1413 = vrot.lane.b32.xlu0 %v1411, 32
    %v1414 = vpop.permute.xlu0 %1413
    %v1416 = vadd.f32 %v1406, %v1414
    %v1417 = vtanh.pop %v1416
    %1419 = vrot.lane.b32.xlu0 %v1417, 32
    %v1420 = vpop.permute.xlu0 %1419
    %v1422 = vmul.f32 %v1403, %v1420
    %v1425 = vunpack.c.l.s4 1966171168
    %v1426 = vunpack.c.0.s8 %v1425
    %v1427 = vlaneseq
    %v1428 = vshrl.u32 %v1427, 7
    %v1429 = vsub.s32 %v1426, %v1428
    %v1430 = vrot.slane %v1422, %v1429
    %v1431 = vcombine.high %v1430, %v1430
    %v1433 = vunpack.c.l.s4 1966171168
    %v1434 = vunpack.c.0.s8 %v1433
    %v1435 = vlaneseq
    %v1436 = vshrl.u32 %v1435, 7
    %v1437 = vsub.s32 %v1434, %v1436
    %v1438 = vrot.slane %v1430, %v1437
    %v1440 = vunpack.c.l.s4 1966171168
    %v1441 = vunpack.c.0.s8 %v1440
    %v1442 = vlaneseq
    %v1443 = vshrl.u32 %v1442, 7
    %v1444 = vsub.s32 %v1441, %v1443
    %v1445 = vrot.slane %v1431, %v1444
    %v1446 = vlaneseq
    %v1447 = vshrl.u32 %v1446, 7
    %v1448 = vsub.s32 0, %v1447
    %v1449 = vrot.slane %v1438, %v1448
    %v1450 = vlaneseq
    %v1451 = vshrl.u32 %v1450, 7
    %v1452 = vsub.s32 0, %v1451
    %v1453 = vrot.slane %v1445, %v1452
    %1454 = vrot.lane.b32.xlu0 %v1449, 64
    %v1455 = vpop.permute.xlu0 %1454
    %1456 = vrot.lane.b32.xlu0 %v1453, 64
    %v1457 = vpop.permute.xlu0 %1456
    %1460 = vst.msk [vmem:[#allocation2 + $0x4] sm:$0x1] %vm867, %v1455
    %1461 = vst.msk [vmem:[#allocation2 + $0xc] sm:$0x1] %vm867, %v1457
    %v1462 = vmul.f32 %v1401, %v1324
    %1464 = vrot.lane.b32.xlu0 %v1404, 32
    %v1465 = vpop.permute.xlu0 %1464
    %v1467 = vmul.f32 %v1401, %v1465
    %1469 = vrot.lane.b32.xlu0 %v1467, 32
    %v1470 = vpop.permute.xlu0 %1469
    %v1472 = vadd.f32 %v1462, %v1470
    %v1473 = vtanh.pop %v1472
    %1475 = vrot.lane.b32.xlu0 %v1473, 32
    %v1476 = vpop.permute.xlu0 %1475
    %v1478 = vmul.f32 %v1401, %v1476
    %1480 = vrot.lane.b32.xlu0 %v1478, 64
    %v1481 = vpop.permute.xlu0 %1480
    %1483 = vrot.lane.b32.xlu0 %v1422, 96
    %v1484 = vpop.permute.xlu0 %1483
    %v1486 = vsel %vm186, %v1481, %v1484
    %v1487 = vpack.c.bf16 %v1486, %v1486
    %v1488 = vrot.slane %v618, 6
    %v1489 = vrot.slane %v622, 5
    %v1490 = vsel %vm672, %v1489, %v1488
    %v1491 = vrot.slane %v620, 6
    %v1492 = vrot.slane %v624, 5
    %v1493 = vsel %vm672, %v1492, %v1491
    %v1497 = vsel %vm675, %v1487, 0
    %1499 = vmatprep.subr.bf16.mxu0 %v652
    %1500 = vmatpush1.bf16.msra.mxu0 %v651
    %1501 = vmatprep.subr.bf16.mxu0 %v654
    %1502 = vmatpush1.bf16.msra.mxu0 %v653
    %1503 = vmatprep.subr.bf16.mxu0 %v656
    %1504 = vmatpush1.bf16.msra.mxu0 %v655
    %1505 = vmatprep.subr.bf16.mxu0 %v658
    %1506 = vmatpush1.bf16.msra.mxu0 %v657
    %1507 = vmatprep.subr.bf16.mxu0 0
    %1508 = vmatpush1.bf16.msra.mxu0 0
    %1509 = vmatprep.subr.bf16.mxu0 0
    %1510 = vmatpush1.bf16.msra.mxu0 0
    %1511 = vmatprep.subr.bf16.mxu0 0
    %1512 = vmatpush1.bf16.msra.mxu0 0
    %1513 = vmatprep.subr.bf16.mxu0 0
    %1514 = vmatpush1.bf16.msra.mxu0 0
    %1515 = vmatprep.subr.bf16.mxu0 0
    %1516 = vmatpush1.bf16.msra.mxu0 0
    %1517 = vmatprep.subr.bf16.mxu0 0
    %1518 = vmatpush1.bf16.msra.mxu0 0
    %1519 = vmatprep.subr.bf16.mxu0 0
    %1520 = vmatpush1.bf16.msra.mxu0 0
    %1521 = vmatprep.subr.bf16.mxu0 0
    %1522 = vmatpush1.bf16.msra.mxu0 0
    %1523 = vmatprep.subr.bf16.mxu0 0
    %1524 = vmatpush1.bf16.msra.mxu0 0
    %1525 = vmatprep.subr.bf16.mxu0 0
    %1526 = vmatpush1.bf16.msra.mxu0 0
    %1527 = vmatprep.subr.bf16.mxu0 0
    %1528 = vmatpush1.bf16.msra.mxu0 0
    %1529 = vmatprep.subr.bf16.mxu0 0
    %1530 = vmatpush1.bf16.msra.mxu0 0
    %1531 = vmatprep.mubr.bf16.mxu0 0
    %1532 = vmatmul.mubr.bf16.gmra.mrb[0].mxu0 %v1497
    %v1533 = vpop.f32.mrb[0].mxu0
    %v1534 = vadd.f32 %v1490, %v1533
    %v1535 = vpop.f32.mrb[0].mxu0
    %v1536 = vadd.f32 %v1493, %v1535
    %v1537 = vpop.f32.mrb[0].mxu0
    %v1538 = vpop.f32.mrb[0].mxu0
    %1539 = vdwg.mxu0
    %v1540 = vxor.u32 %v1534, 2147483648
    %v1541 = vxor.u32 %v1536, 2147483648
    %v1542 = vmul.f32 %v1540, 1.442695
    %v1543 = vpow.pop %v1542
    %v1544 = vmul.f32 %v1541, 1.442695
    %v1545 = vpow.pop %v1544
    %v1546 = vadd.f32 %v1543, 1.0
    %v1547 = vadd.f32 %v1545, 1.0
    %v1548 = vrcp.pop %v1546
    %v1549 = vmul.f32 1.0, %v1548
    %v1550 = vrcp.pop %v1547
    %v1551 = vmul.f32 1.0, %v1550
    %v1552 = vtanh.pop %v1534
    %v1553 = vtanh.pop %v1536
    %v1554 = vmul.f32 %v1551, %v1416
    %1556 = vrot.lane.b32.xlu0 %v1553, 32
    %v1557 = vpop.permute.xlu0 %1556
    %v1559 = vmul.f32 %v1551, %v1557
    %1561 = vrot.lane.b32.xlu0 %v1559, 32
    %v1562 = vpop.permute.xlu0 %1561
    %v1564 = vadd.f32 %v1554, %v1562
    %v1565 = vtanh.pop %v1564
    %1567 = vrot.lane.b32.xlu0 %v1565, 32
    %v1568 = vpop.permute.xlu0 %1567
    %v1570 = vmul.f32 %v1551, %v1568
    %v1573 = vunpack.c.l.s4 1966171168
    %v1574 = vunpack.c.0.s8 %v1573
    %v1575 = vlaneseq
    %v1576 = vshrl.u32 %v1575, 7
    %v1577 = vsub.s32 %v1574, %v1576
    %v1578 = vrot.slane %v1570, %v1577
    %v1579 = vcombine.high %v1578, %v1578
    %v1581 = vunpack.c.l.s4 1966171168
    %v1582 = vunpack.c.0.s8 %v1581
    %v1583 = vlaneseq
    %v1584 = vshrl.u32 %v1583, 7
    %v1585 = vsub.s32 %v1582, %v1584
    %v1586 = vrot.slane %v1578, %v1585
    %v1588 = vunpack.c.l.s4 1966171168
    %v1589 = vunpack.c.0.s8 %v1588
    %v1590 = vlaneseq
    %v1591 = vshrl.u32 %v1590, 7
    %v1592 = vsub.s32 %v1589, %v1591
    %v1593 = vrot.slane %v1579, %v1592
    %v1594 = vlaneseq
    %v1595 = vshrl.u32 %v1594, 7
    %v1596 = vsub.s32 0, %v1595
    %v1597 = vrot.slane %v1586, %v1596
    %v1598 = vlaneseq
    %v1599 = vshrl.u32 %v1598, 7
    %v1600 = vsub.s32 0, %v1599
    %v1601 = vrot.slane %v1593, %v1600
    %1602 = vrot.lane.b32.xlu0 %v1597, 64
    %v1603 = vpop.permute.xlu0 %1602
    %1604 = vrot.lane.b32.xlu0 %v1601, 64
    %v1605 = vpop.permute.xlu0 %1604
    %1608 = vst.msk [vmem:[#allocation2 + $0x5] sm:$0x1] %vm867, %v1603
    %1609 = vst.msk [vmem:[#allocation2 + $0xd] sm:$0x1] %vm867, %v1605
    %v1610 = vmul.f32 %v1549, %v1472
    %1612 = vrot.lane.b32.xlu0 %v1552, 32
    %v1613 = vpop.permute.xlu0 %1612
    %v1615 = vmul.f32 %v1549, %v1613
    %1617 = vrot.lane.b32.xlu0 %v1615, 32
    %v1618 = vpop.permute.xlu0 %1617
    %v1620 = vadd.f32 %v1610, %v1618
    %v1621 = vtanh.pop %v1620
    %1623 = vrot.lane.b32.xlu0 %v1621, 32
    %v1624 = vpop.permute.xlu0 %1623
    %v1626 = vmul.f32 %v1549, %v1624
    %1628 = vrot.lane.b32.xlu0 %v1626, 64
    %v1629 = vpop.permute.xlu0 %1628
    %1631 = vrot.lane.b32.xlu0 %v1570, 96
    %v1632 = vpop.permute.xlu0 %1631
    %v1634 = vsel %vm186, %v1629, %v1632
    %v1635 = vpack.c.bf16 %v1634, %v1634
    %v1636 = vrot.slane %v618, 7
    %v1637 = vrot.slane %v622, 6
    %v1638 = vsel %vm672, %v1637, %v1636
    %v1639 = vrot.slane %v620, 7
    %v1640 = vrot.slane %v624, 6
    %v1641 = vsel %vm672, %v1640, %v1639
    %v1645 = vsel %vm675, %v1635, 0
    %1647 = vmatprep.subr.bf16.mxu0 %v652
    %1648 = vmatpush1.bf16.msra.mxu0 %v651
    %1649 = vmatprep.subr.bf16.mxu0 %v654
    %1650 = vmatpush1.bf16.msra.mxu0 %v653
    %1651 = vmatprep.subr.bf16.mxu0 %v656
    %1652 = vmatpush1.bf16.msra.mxu0 %v655
    %1653 = vmatprep.subr.bf16.mxu0 %v658
    %1654 = vmatpush1.bf16.msra.mxu0 %v657
    %1655 = vmatprep.subr.bf16.mxu0 0
    %1656 = vmatpush1.bf16.msra.mxu0 0
    %1657 = vmatprep.subr.bf16.mxu0 0
    %1658 = vmatpush1.bf16.msra.mxu0 0
    %1659 = vmatprep.subr.bf16.mxu0 0
    %1660 = vmatpush1.bf16.msra.mxu0 0
    %1661 = vmatprep.subr.bf16.mxu0 0
    %1662 = vmatpush1.bf16.msra.mxu0 0
    %1663 = vmatprep.subr.bf16.mxu0 0
    %1664 = vmatpush1.bf16.msra.mxu0 0
    %1665 = vmatprep.subr.bf16.mxu0 0
    %1666 = vmatpush1.bf16.msra.mxu0 0
    %1667 = vmatprep.subr.bf16.mxu0 0
    %1668 = vmatpush1.bf16.msra.mxu0 0
    %1669 = vmatprep.subr.bf16.mxu0 0
    %1670 = vmatpush1.bf16.msra.mxu0 0
    %1671 = vmatprep.subr.bf16.mxu0 0
    %1672 = vmatpush1.bf16.msra.mxu0 0
    %1673 = vmatprep.subr.bf16.mxu0 0
    %1674 = vmatpush1.bf16.msra.mxu0 0
    %1675 = vmatprep.subr.bf16.mxu0 0
    %1676 = vmatpush1.bf16.msra.mxu0 0
    %1677 = vmatprep.subr.bf16.mxu0 0
    %1678 = vmatpush1.bf16.msra.mxu0 0
    %1679 = vmatprep.mubr.bf16.mxu0 0
    %1680 = vmatmul.mubr.bf16.gmra.mrb[0].mxu0 %v1645
    %v1681 = vpop.f32.mrb[0].mxu0
    %v1682 = vadd.f32 %v1638, %v1681
    %v1683 = vpop.f32.mrb[0].mxu0
    %v1684 = vadd.f32 %v1641, %v1683
    %v1685 = vpop.f32.mrb[0].mxu0
    %v1686 = vpop.f32.mrb[0].mxu0
    %1687 = vdwg.mxu0
    %v1688 = vxor.u32 %v1682, 2147483648
    %v1689 = vxor.u32 %v1684, 2147483648
    %v1690 = vmul.f32 %v1688, 1.442695
    %v1691 = vpow.pop %v1690
    %v1692 = vmul.f32 %v1689, 1.442695
    %v1693 = vpow.pop %v1692
    %v1694 = vadd.f32 %v1691, 1.0
    %v1695 = vadd.f32 %v1693, 1.0
    %v1696 = vrcp.pop %v1694
    %v1697 = vmul.f32 1.0, %v1696
    %v1698 = vrcp.pop %v1695
    %v1699 = vmul.f32 1.0, %v1698
    %v1700 = vtanh.pop %v1682
    %v1701 = vtanh.pop %v1684
    %v1702 = vmul.f32 %v1699, %v1564
    %1704 = vrot.lane.b32.xlu0 %v1701, 32
    %v1705 = vpop.permute.xlu0 %1704
    %v1707 = vmul.f32 %v1699, %v1705
    %1709 = vrot.lane.b32.xlu0 %v1707, 32
    %v1710 = vpop.permute.xlu0 %1709
    %v1712 = vadd.f32 %v1702, %v1710
    %v1713 = vtanh.pop %v1712
    %1715 = vrot.lane.b32.xlu0 %v1713, 32
    %v1716 = vpop.permute.xlu0 %1715
    %v1718 = vmul.f32 %v1699, %v1716
    %v1721 = vunpack.c.l.s4 1966171168
    %v1722 = vunpack.c.0.s8 %v1721
    %v1723 = vlaneseq
    %v1724 = vshrl.u32 %v1723, 7
    %v1725 = vsub.s32 %v1722, %v1724
    %v1726 = vrot.slane %v1718, %v1725
    %v1727 = vcombine.high %v1726, %v1726
    %v1729 = vunpack.c.l.s4 1966171168
    %v1730 = vunpack.c.0.s8 %v1729
    %v1731 = vlaneseq
    %v1732 = vshrl.u32 %v1731, 7
    %v1733 = vsub.s32 %v1730, %v1732
    %v1734 = vrot.slane %v1726, %v1733
    %v1736 = vunpack.c.l.s4 1966171168
    %v1737 = vunpack.c.0.s8 %v1736
    %v1738 = vlaneseq
    %v1739 = vshrl.u32 %v1738, 7
    %v1740 = vsub.s32 %v1737, %v1739
    %v1741 = vrot.slane %v1727, %v1740
    %v1742 = vlaneseq
    %v1743 = vshrl.u32 %v1742, 7
    %v1744 = vsub.s32 0, %v1743
    %v1745 = vrot.slane %v1734, %v1744
    %v1746 = vlaneseq
    %v1747 = vshrl.u32 %v1746, 7
    %v1748 = vsub.s32 0, %v1747
    %v1749 = vrot.slane %v1741, %v1748
    %1750 = vrot.lane.b32.xlu0 %v1745, 64
    %v1751 = vpop.permute.xlu0 %1750
    %1752 = vrot.lane.b32.xlu0 %v1749, 64
    %v1753 = vpop.permute.xlu0 %1752
    %1756 = vst.msk [vmem:[#allocation2 + $0x6] sm:$0x1] %vm867, %v1751
    %1757 = vst.msk [vmem:[#allocation2 + $0xe] sm:$0x1] %vm867, %v1753
    %v1758 = vmul.f32 %v1697, %v1620
    %1760 = vrot.lane.b32.xlu0 %v1700, 32
    %v1761 = vpop.permute.xlu0 %1760
    %v1763 = vmul.f32 %v1697, %v1761
    %1765 = vrot.lane.b32.xlu0 %v1763, 32
    %v1766 = vpop.permute.xlu0 %1765
    %v1768 = vadd.f32 %v1758, %v1766
    %v1769 = vtanh.pop %v1768
    %1771 = vrot.lane.b32.xlu0 %v1769, 32
    %v1772 = vpop.permute.xlu0 %1771
    %v1774 = vmul.f32 %v1697, %v1772
    %1776 = vrot.lane.b32.xlu0 %v1774, 64
    %v1777 = vpop.permute.xlu0 %1776
    %1779 = vrot.lane.b32.xlu0 %v1718, 96
    %v1780 = vpop.permute.xlu0 %1779
    %v1782 = vsel %vm186, %v1777, %v1780
    %v1783 = vpack.c.bf16 %v1782, %v1782
    %v1785 = vsel %vm675, %v1783, 0
    %1787 = vmatprep.subr.bf16.mxu0 %v652
    %1788 = vmatpush1.bf16.msra.mxu0 %v651
    %1789 = vmatprep.subr.bf16.mxu0 %v654
    %1790 = vmatpush1.bf16.msra.mxu0 %v653
    %1791 = vmatprep.subr.bf16.mxu0 %v656
    %1792 = vmatpush1.bf16.msra.mxu0 %v655
    %1793 = vmatprep.subr.bf16.mxu0 %v658
    %1794 = vmatpush1.bf16.msra.mxu0 %v657
    %1795 = vmatprep.subr.bf16.mxu0 0
    %1796 = vmatpush1.bf16.msra.mxu0 0
    %1797 = vmatprep.subr.bf16.mxu0 0
    %1798 = vmatpush1.bf16.msra.mxu0 0
    %1799 = vmatprep.subr.bf16.mxu0 0
    %1800 = vmatpush1.bf16.msra.mxu0 0
    %1801 = vmatprep.subr.bf16.mxu0 0
    %1802 = vmatpush1.bf16.msra.mxu0 0
    %1803 = vmatprep.subr.bf16.mxu0 0
    %1804 = vmatpush1.bf16.msra.mxu0 0
    %1805 = vmatprep.subr.bf16.mxu0 0
    %1806 = vmatpush1.bf16.msra.mxu0 0
    %1807 = vmatprep.subr.bf16.mxu0 0
    %1808 = vmatpush1.bf16.msra.mxu0 0
    %1809 = vmatprep.subr.bf16.mxu0 0
    %1810 = vmatpush1.bf16.msra.mxu0 0
    %1811 = vmatprep.subr.bf16.mxu0 0
    %1812 = vmatpush1.bf16.msra.mxu0 0
    %1813 = vmatprep.subr.bf16.mxu0 0
    %1814 = vmatpush1.bf16.msra.mxu0 0
    %1815 = vmatprep.subr.bf16.mxu0 0
    %1816 = vmatpush1.bf16.msra.mxu0 0
    %1817 = vmatprep.subr.bf16.mxu0 0
    %1818 = vmatpush1.bf16.msra.mxu0 0
    %1819 = vmatprep.mubr.bf16.mxu0 0
    %1820 = vmatmul.mubr.bf16.gmra.mrb[0].mxu0 %v1785
    %v1821 = vpop.f32.mrb[0].mxu0
    %v1822 = vpop.f32.mrb[0].mxu0
    %v1823 = vadd.f32 0.0, %v1822
    %v1824 = vpop.f32.mrb[0].mxu0
    %v1825 = vpop.f32.mrb[0].mxu0
    %1826 = vdwg.mxu0
    %v1827 = vrot.slane %v57, 1
    %v1828 = vlaneseq
    %v1829 = vshrl.u32 %v1828, 7
    %v1830 = vsub.s32 0, %v1829
    %v1831 = vrot.slane %v1827, %v1830
    %v1833 = vadd.f32 %v1823, %v1831
    %v1834 = vxor.u32 %v1833, 2147483648
    %v1835 = vmul.f32 %v1834, 1.442695
    %v1836 = vpow.pop %v1835
    %v1837 = vadd.f32 %v1836, 1.0
    %v1838 = vrcp.pop %v1837
    %v1839 = vmul.f32 1.0, %v1838
    %v1840 = vtanh.pop %v1833
    %v1841 = vmul.f32 %v1839, %v1712
    %1843 = vrot.lane.b32.xlu0 %v1840, 32
    %v1844 = vpop.permute.xlu0 %1843
    %v1846 = vmul.f32 %v1839, %v1844
    %1848 = vrot.lane.b32.xlu0 %v1846, 32
    %v1849 = vpop.permute.xlu0 %1848
    %v1851 = vadd.f32 %v1841, %v1849
    %v1852 = vtanh.pop %v1851
    %1854 = vrot.lane.b32.xlu0 %v1852, 32
    %v1855 = vpop.permute.xlu0 %1854
    %v1857 = vmul.f32 %v1839, %v1855
    %v1860 = vunpack.c.l.s4 1966171168
    %v1861 = vunpack.c.0.s8 %v1860
    %v1862 = vlaneseq
    %v1863 = vshrl.u32 %v1862, 7
    %v1864 = vsub.s32 %v1861, %v1863
    %v1865 = vrot.slane %v1857, %v1864
    %v1866 = vcombine.high %v1865, %v1865
    %v1868 = vunpack.c.l.s4 1966171168
    %v1869 = vunpack.c.0.s8 %v1868
    %v1870 = vlaneseq
    %v1871 = vshrl.u32 %v1870, 7
    %v1872 = vsub.s32 %v1869, %v1871
    %v1873 = vrot.slane %v1865, %v1872
    %v1875 = vunpack.c.l.s4 1966171168
    %v1876 = vunpack.c.0.s8 %v1875
    %v1877 = vlaneseq
    %v1878 = vshrl.u32 %v1877, 7
    %v1879 = vsub.s32 %v1876, %v1878
    %v1880 = vrot.slane %v1866, %v1879
    %v1881 = vlaneseq
    %v1882 = vshrl.u32 %v1881, 7
    %v1883 = vsub.s32 0, %v1882
    %v1884 = vrot.slane %v1873, %v1883
    %v1885 = vlaneseq
    %v1886 = vshrl.u32 %v1885, 7
    %v1887 = vsub.s32 0, %v1886
    %v1888 = vrot.slane %v1880, %v1887
    %1889 = vrot.lane.b32.xlu0 %v1884, 64
    %v1890 = vpop.permute.xlu0 %1889
    %1891 = vrot.lane.b32.xlu0 %v1888, 64
    %v1892 = vpop.permute.xlu0 %1891
    %1895 = vst.msk [vmem:[#allocation2 + $0x7] sm:$0x1] %vm867, %v1890
    %1896 = vst.msk [vmem:[#allocation2 + $0xf] sm:$0x1] %vm867, %v1892
    %v1897 = vld [vmem:[#allocation2] sm:$0xff]
    %v1898 = vld [vmem:[#allocation2 + $0x8] sm:$0xff]
    %v1899 = vpack.c.bf16 %v1898, %v1897
    %1900 = vrot.lane.b32.xlu0 %v182, 96
    %v1901 = vpop.permute.xlu0 %1900
    %1902 = vrot.lane.b32.xlu0 %v183, 96
    %v1903 = vpop.permute.xlu0 %1902
    %1907 = vrot.lane.b32.xlu0 %v173, 96
    %v1908 = vpop.permute.xlu0 %1907
    %v1911 = vsel %vm186, %v1899, 0
    %1913 = vmatprep.subr.bf16.mxu0 0
    %1914 = vmatpush1.bf16.msra.mxu0 %v1901
    %1915 = vmatprep.subr.bf16.mxu0 0
    %1916 = vmatpush1.bf16.msra.mxu0 %v1903
    %1917 = vmatprep.subr.bf16.mxu0 0
    %1918 = vmatpush1.bf16.msra.mxu0 0
    %1919 = vmatprep.subr.bf16.mxu0 0
    %1920 = vmatpush1.bf16.msra.mxu0 0
    %1921 = vmatprep.subr.bf16.mxu0 0
    %1922 = vmatpush1.bf16.msra.mxu0 0
    %1923 = vmatprep.subr.bf16.mxu0 0
    %1924 = vmatpush1.bf16.msra.mxu0 0
    %1925 = vmatprep.subr.bf16.mxu0 0
    %1926 = vmatpush1.bf16.msra.mxu0 0
    %1927 = vmatprep.subr.bf16.mxu0 0
    %1928 = vmatpush1.bf16.msra.mxu0 0
    %1929 = vmatprep.subr.bf16.mxu0 0
    %1930 = vmatpush1.bf16.msra.mxu0 0
    %1931 = vmatprep.subr.bf16.mxu0 0
    %1932 = vmatpush1.bf16.msra.mxu0 0
    %1933 = vmatprep.subr.bf16.mxu0 0
    %1934 = vmatpush1.bf16.msra.mxu0 0
    %1935 = vmatprep.subr.bf16.mxu0 0
    %1936 = vmatpush1.bf16.msra.mxu0 0
    %1937 = vmatprep.subr.bf16.mxu0 0
    %1938 = vmatpush1.bf16.msra.mxu0 0
    %1939 = vmatprep.subr.bf16.mxu0 0
    %1940 = vmatpush1.bf16.msra.mxu0 0
    %1941 = vmatprep.subr.bf16.mxu0 0
    %1942 = vmatpush1.bf16.msra.mxu0 0
    %1943 = vmatprep.subr.bf16.mxu0 0
    %1944 = vmatpush1.bf16.msra.mxu0 0
    %1945 = vmatprep.mubr.bf16.mxu0 0
    %1946 = vmatmul.mubr.bf16.gmra.mrb[0].mxu0 %v1911
    %v1947 = vpop.f32.mrb[0].mxu0
    %v1948 = vadd.f32 %v1908, %v1947
    %v1949 = vpop.f32.mrb[0].mxu0
    %v1950 = vpop.f32.mrb[0].mxu0
    %v1951 = vadd.f32 %v1908, %v1950
    %v1952 = vpop.f32.mrb[0].mxu0
    %1953 = vdwg.mxu0
    %v1954 = vpack.c.bf16 %v1951, %v1948
    %v1957 = vunpack.c.l.b16 %v55
    %v1958 = vunpack.c.l.b16 %v56
    %v1959 = vpack.c.b16 %v1958, %v1957
    %1961 = vrot.lane.b32.xlu0 %v173, 80
    %v1962 = vpop.permute.xlu0 %1961
    %vm1964 = vcmask 130048
    %v1966 = vsel %vm1964, %v1954, 0
    %1968 = vmatprep.subr.bf16.mxu0 0
    %1969 = vmatpush1.bf16.msra.mxu0 %v1959
    %1970 = vmatprep.subr.bf16.mxu0 0
    %1971 = vmatpush1.bf16.msra.mxu0 0
    %1972 = vmatprep.subr.bf16.mxu0 0
    %1973 = vmatpush1.bf16.msra.mxu0 0
    %1974 = vmatprep.subr.bf16.mxu0 0
    %1975 = vmatpush1.bf16.msra.mxu0 0
    %1976 = vmatprep.subr.bf16.mxu0 0
    %1977 = vmatpush1.bf16.msra.mxu0 0
    %1978 = vmatprep.subr.bf16.mxu0 0
    %1979 = vmatpush1.bf16.msra.mxu0 0
    %1980 = vmatprep.subr.bf16.mxu0 0
    %1981 = vmatpush1.bf16.msra.mxu0 0
    %1982 = vmatprep.subr.bf16.mxu0 0
    %1983 = vmatpush1.bf16.msra.mxu0 0
    %1984 = vmatprep.subr.bf16.mxu0 0
    %1985 = vmatpush1.bf16.msra.mxu0 0
    %1986 = vmatprep.subr.bf16.mxu0 0
    %1987 = vmatpush1.bf16.msra.mxu0 0
    %1988 = vmatprep.subr.bf16.mxu0 0
    %1989 = vmatpush1.bf16.msra.mxu0 0
    %1990 = vmatprep.subr.bf16.mxu0 0
    %1991 = vmatpush1.bf16.msra.mxu0 0
    %1992 = vmatprep.subr.bf16.mxu0 0
    %1993 = vmatpush1.bf16.msra.mxu0 0
    %1994 = vmatprep.subr.bf16.mxu0 0
    %1995 = vmatpush1.bf16.msra.mxu0 0
    %1996 = vmatprep.subr.bf16.mxu0 0
    %1997 = vmatpush1.bf16.msra.mxu0 0
    %1998 = vmatprep.subr.bf16.mxu0 0
    %1999 = vmatpush1.bf16.msra.mxu0 0
    %2000 = vmatprep.mubr.bf16.mxu0 0
    %2001 = vmatmul.mubr.bf16.gmra.mrb[0].mxu0 %v1966
    %v2002 = vpop.f32.mrb[0].mxu0
    %v2003 = vadd.f32 %v1962, %v2002
    %v2004 = vpop.f32.mrb[0].mxu0
    %v2005 = vpop.f32.mrb[0].mxu0
    %v2006 = vadd.f32 %v1962, %v2005
    %v2007 = vpop.f32.mrb[0].mxu0
    %2008 = vdwg.mxu0
    %2009 = vst.msk [vmem:[#allocation6] sm:$0xff] %vm1964, %v2003
    %2010 = vst.msk [vmem:[#allocation6 + $0x8] sm:$0xff] %vm1964, %v2006
    // Predicated region
    $region26: #{policy_forward_pallas.1} parent=1 // pred_check
      _
    $region27: #{policy_forward_pallas.1} parent=1 // pred_check_branch
      %2012 = sbr.rel (0) target = $region29
    $region28: #{policy_forward_pallas.1} parent=1 // pred_region
      %s2014 = ssub.s32 256, 256
      %2015 = vsyncadd [#allocation5], %s2014
      %s2016 = sshll.u32 [#allocation6], 4
      %s2017 = int_to_ptr.vmem [resolvable:$true] %s2016
      %2022 = dma.vmem_to_hbm [thread:$0]  %s2017, 256, %s5, [#allocation5], 128, 128, 8
    $region29: #{policy_forward_pallas.1} parent=1 // pred_fallthru
      _
    // Predicated region
    $region30: #{policy_forward_pallas.1} parent=1 // pred_check
      _
    $region31: #{policy_forward_pallas.1} parent=1 // pred_check_branch
      %2024 = sbr.rel (0) target = $region33
    $region32: #{policy_forward_pallas.1} parent=1 // pred_region
      %2025 = dma.done [#allocation5], 256
    $region33: #{policy_forward_pallas.1} parent=1 // pred_fallthru
      _
    %2026 = vsyncpa [#allocation4], 1
    %2027 = vsyncpa [#allocation5], 1

</llo_original>
